<compile_context>
chip_gen: v7x
topology: tpu7x:2x2x1
jax: 0.10.0
libtpu: 0.0.40
codegen_flags: <defaults>
</compile_context>

<pallas_src>
import jax
import jax.numpy as jnp
import numpy as np
from jax.experimental import pallas as pl
from jax.experimental.pallas import tpu as pltpu

# ----------------------------- small synthetic config ------------------------
B, T = 2, 16                       # batch, time
C_IN, H, W = 3, 16, 16             # per-frame image
PATCH = 4
NP = (H // PATCH) * (W // PATCH)   # 16 patches / frame
PD = C_IN * PATCH * PATCH          # 48 patch dim
F_BACKBONE = 32                    # backbone.num_features (synthetic)
C_OUT = 32                         # out_channels == bottleneck_size

# TemporalConv1D conv_type = ['K3','P2','K3','P2'], valid conv, floor pooling
L1 = T - 2          # 14 after first K3
L1P = L1 // 2       # 7  after first P2
L2 = L1P - 2        # 5  after second K3
T_OUT = L2 // 2     # 2  after second P2


# --------------------- fused kernel: backbone + TemporalConv1D ----------------
def fused_kernel(patches_ref, pool_ref, wp_ref, bp_ref,
                 w1_ref, s1_ref, o1_ref, w2_ref, s2_ref, o2_ref,
                 out_ref, f_s, y_s, p_s, z_s):
    # ---- backbone: patch-embed matmul + bias + ReLU, all frames at once ----
    x = patches_ref[0]                                                 # (T*NP, PD)
    y = jnp.dot(x, wp_ref[...], preferred_element_type=jnp.float32)   # (T*NP, F)
    y = jnp.maximum(y + bp_ref[...], 0.0)
    # per-frame global average pool expressed as one MXU matmul:
    # (T, T*NP) @ (T*NP, F) -> (T, F)
    f_s[...] = jnp.dot(pool_ref[...], y, preferred_element_type=jnp.float32)
    # dropout_s / dropout_t are identity at inference.

    # ---- conv1: K3 valid conv (3 shifted MXU dots) + folded BN + ReLU ----
    c1 = (jnp.dot(f_s[0:L1, :],     w1_ref[0], preferred_element_type=jnp.float32)
          + jnp.dot(f_s[1:L1 + 1, :], w1_ref[1], preferred_element_type=jnp.float32)
          + jnp.dot(f_s[2:T, :],      w1_ref[2], preferred_element_type=jnp.float32))
    y_s[...] = jnp.maximum(c1 * s1_ref[...] + o1_ref[...], 0.0)       # (L1, C)

    # ---- P2 max-pool (floor), vectorized via strided sublane loads ----
    p_s[...] = jnp.maximum(y_s[pl.ds(0, L1P, stride=2), :],
                           y_s[pl.ds(1, L1P, stride=2), :])           # (L1P, C)

    # ---- conv2: K3 valid conv + folded BN + ReLU ----
    c2 = (jnp.dot(p_s[0:L2, :],       w2_ref[0], preferred_element_type=jnp.float32)
          + jnp.dot(p_s[1:L2 + 1, :], w2_ref[1], preferred_element_type=jnp.float32)
          + jnp.dot(p_s[2:L1P, :],    w2_ref[2], preferred_element_type=jnp.float32))
    z_s[...] = jnp.maximum(c2 * s2_ref[...] + o2_ref[...], 0.0)       # (L2, C)

    # ---- final P2 max-pool, single block store ----
    out_ref[0] = jnp.maximum(z_s[pl.ds(0, T_OUT, stride=2), :],
                             z_s[pl.ds(1, T_OUT, stride=2), :])       # (T_OUT, C)


def fused_forward(patches, pool_mat, params):
    return pl.pallas_call(
        fused_kernel,
        out_shape=jax.ShapeDtypeStruct((B, T_OUT, C_OUT), jnp.float32),
        grid=(B,),
        in_specs=[
            pl.BlockSpec((1, T * NP, PD), lambda b: (b, 0, 0)),
            pl.BlockSpec((T, T * NP), lambda b: (0, 0)),
            pl.BlockSpec((PD, F_BACKBONE), lambda b: (0, 0)),
            pl.BlockSpec((1, F_BACKBONE), lambda b: (0, 0)),
            pl.BlockSpec((3, F_BACKBONE, C_OUT), lambda b: (0, 0, 0)),
            pl.BlockSpec((1, C_OUT), lambda b: (0, 0)),
            pl.BlockSpec((1, C_OUT), lambda b: (0, 0)),
            pl.BlockSpec((3, C_OUT, C_OUT), lambda b: (0, 0, 0)),
            pl.BlockSpec((1, C_OUT), lambda b: (0, 0)),
            pl.BlockSpec((1, C_OUT), lambda b: (0, 0)),
        ],
        out_specs=pl.BlockSpec((1, T_OUT, C_OUT), lambda b: (b, 0, 0)),
        scratch_shapes=[
            pltpu.VMEM((T, F_BACKBONE), jnp.float32),   # feats (per batch row)
            pltpu.VMEM((L1, C_OUT), jnp.float32),       # conv1 output
            pltpu.VMEM((L1P, C_OUT), jnp.float32),      # pool1 output
            pltpu.VMEM((L2, C_OUT), jnp.float32),       # conv2 output
        ],
        compiler_params=pltpu.CompilerParams(dimension_semantics=("parallel",)),
    )(patches, pool_mat, params["w_patch"], params["b_patch"],
      params["w1"], params["s1"], params["o1"],
      params["w2"], params["s2"], params["o2"])


# --------------------------------- glue ---------------------------------------
def patchify(x):
    # x: (B, T, C, H, W) -> (B, T*NP, C*P*P)   (im2col for a stride-P patch conv)
    b, t = x.shape[:2]
    x = x.reshape(b, t, C_IN, H // PATCH, PATCH, W // PATCH, PATCH)
    x = x.transpose(0, 1, 3, 5, 2, 4, 6)        # b, t, hb, wb, c, ph, pw
    return x.reshape(b, t * NP, PD)


def make_pool_mat():
    # (T, T*NP) frame-averaging matrix: GAP over each frame's NP patches.
    frame_of_patch = jnp.arange(T * NP) // NP
    return (frame_of_patch[None, :] == jnp.arange(T)[:, None]).astype(jnp.float32) / NP


def update_v_length(vl):
    for m in ("K3", "P2", "K3", "P2"):
        if m[0] == "K":
            vl = vl - (int(m[1]) - 1)
        else:
            vl = vl // int(m[1])
    return vl


def timm_visual_encoder_forward(x, v_length, params):
    patches = patchify(x)                                  # (B, T*NP, PD)
    pool_mat = make_pool_mat()                             # (T, T*NP)
    out = fused_forward(patches, pool_mat, params)         # (B, T_OUT, C_OUT)
    return out, update_v_length(v_length)


# ------------------------- deterministic parameters ---------------------------
def init_params(key):
    ks = jax.random.split(key, 16)
    eps = 1e-5

    def bn_fold(kb, kg, kbe, km, kv, c, conv_bias_scale=0.01):
        b = conv_bias_scale * jax.random.normal(kb, (c,), jnp.float32)
        g = 1.0 + 0.1 * jax.random.normal(kg, (c,), jnp.float32)
        be = 0.05 * jax.random.normal(kbe, (c,), jnp.float32)
        m = 0.01 * jax.random.normal(km, (c,), jnp.float32)
        v = 1.0 + 0.1 * jnp.abs(jax.random.normal(kv, (c,), jnp.float32))
        scale = g / jnp.sqrt(v + eps)
        shift = be + (b - m) * scale
        return scale.reshape(1, c), shift.reshape(1, c)

    params = {
        "w_patch": 0.05 * jax.random.normal(ks[0], (PD, F_BACKBONE), jnp.float32),
        "b_patch": 0.01 * jax.random.normal(ks[1], (1, F_BACKBONE), jnp.float32),
        "w1": 0.08 * jax.random.normal(ks[2], (3, F_BACKBONE, C_OUT), jnp.float32),
        "w2": 0.08 * jax.random.normal(ks[3], (3, C_OUT, C_OUT), jnp.float32),
    }
    params["s1"], params["o1"] = bn_fold(ks[4], ks[5], ks[6], ks[7], ks[8], C_OUT)
    params["s2"], params["o2"] = bn_fold(ks[9], ks[10], ks[11], ks[12], ks[13], C_OUT)
    return params


# ------------------------------ pure-JAX reference ----------------------------
def reference_forward(x, v_length, params):
    patches = patchify(x)                                                  # (B, T*NP, PD)
    y = jnp.maximum(patches @ params["w_patch"] + params["b_patch"], 0.0)  # (B, T*NP, F)
    f = y.reshape(B, T, NP, F_BACKBONE).mean(axis=2)                       # (B, T, F)

    def conv_bn_relu(t_, w, s, o):
        L = t_.shape[1] - 2
        y_ = t_[:, 0:L] @ w[0] + t_[:, 1:L + 1] @ w[1] + t_[:, 2:L + 2] @ w[2]
        return jnp.maximum(y_ * s + o, 0.0)

    def pool2(t_):
        L = t_.shape[1] // 2
        return jnp.maximum(t_[:, 0:2 * L:2], t_[:, 1:2 * L:2])

    out = pool2(conv_bn_relu(f, params["w1"], params["s1"], params["o1"]))
    out = pool2(conv_bn_relu(out, params["w2"], params["s2"], params["o2"]))
    return out, update_v_length(v_length)


if __name__ == "__main__":
    key = jax.random.PRNGKey(0)
    kx, kp = jax.random.split(key)
    x = jax.random.normal(kx, (B, T, C_IN, H, W), jnp.float32)
    v_length = jnp.array([T, T - 3], dtype=jnp.int32)
    params = init_params(kp)

    out, vlen = timm_visual_encoder_forward(x, v_length, params)
    out = jax.block_until_ready(out)

    ref_out, ref_vlen = reference_forward(x, v_length, params)
    assert out.shape == (B, T_OUT, C_OUT), out.shape
    np.testing.assert_allclose(np.asarray(out), np.asarray(ref_out), rtol=5e-3, atol=5e-3)
    np.testing.assert_array_equal(np.asarray(vlen), np.asarray(ref_vlen))
    print("KERNEL_OK")
</pallas_src>

<mosaic_0001>
module attributes {stable_mosaic.version = 11 : i64} {
  func.func @fused_kernel(%arg0: i32, %arg1: memref<1x256x48xf32, #tpu.memory_space<vmem>>, %arg2: memref<16x256xf32, #tpu.memory_space<vmem>>, %arg3: memref<48x32xf32, #tpu.memory_space<vmem>>, %arg4: memref<1x32xf32, #tpu.memory_space<vmem>>, %arg5: memref<3x32x32xf32, #tpu.memory_space<vmem>>, %arg6: memref<1x32xf32, #tpu.memory_space<vmem>>, %arg7: memref<1x32xf32, #tpu.memory_space<vmem>>, %arg8: memref<3x32x32xf32, #tpu.memory_space<vmem>>, %arg9: memref<1x32xf32, #tpu.memory_space<vmem>>, %arg10: memref<1x32xf32, #tpu.memory_space<vmem>>, %arg11: memref<1x2x32xf32, #tpu.memory_space<vmem>>, %arg12: memref<16x32xf32, #tpu.memory_space<vmem>>, %arg13: memref<14x32xf32, #tpu.memory_space<vmem>>, %arg14: memref<7x32xf32, #tpu.memory_space<vmem>>, %arg15: memref<5x32xf32, #tpu.memory_space<vmem>>) attributes {dimension_semantics = [#tpu.dimension_semantics<parallel>], iteration_bounds = array<i64: 2>, scalar_prefetch = 0 : i64, scratch_operands = 4 : i64, tpu.core_type = #tpu.core_type<tc>, window_params = [{transform_indices = @transform_0, window_bounds = array<i64: 1, 256, 48>}, {pipeline_mode = #tpu.pipeline_mode<synchronous>, transform_indices = @transform_1, window_bounds = array<i64: 16, 256>}, {pipeline_mode = #tpu.pipeline_mode<synchronous>, transform_indices = @transform_2, window_bounds = array<i64: 48, 32>}, {pipeline_mode = #tpu.pipeline_mode<synchronous>, transform_indices = @transform_3, window_bounds = array<i64: 1, 32>}, {pipeline_mode = #tpu.pipeline_mode<synchronous>, transform_indices = @transform_4, window_bounds = array<i64: 3, 32, 32>}, {pipeline_mode = #tpu.pipeline_mode<synchronous>, transform_indices = @transform_5, window_bounds = array<i64: 1, 32>}, {pipeline_mode = #tpu.pipeline_mode<synchronous>, transform_indices = @transform_6, window_bounds = array<i64: 1, 32>}, {pipeline_mode = #tpu.pipeline_mode<synchronous>, transform_indices = @transform_7, window_bounds = array<i64: 3, 32, 32>}, {pipeline_mode = #tpu.pipeline_mode<synchronous>, transform_indices = @transform_8, window_bounds = array<i64: 1, 32>}, {pipeline_mode = #tpu.pipeline_mode<synchronous>, transform_indices = @transform_9, window_bounds = array<i64: 1, 32>}, {transform_indices = @transform_10, window_bounds = array<i64: 1, 2, 32>}]} {
    %c0 = arith.constant 0 : index
    %c0_0 = arith.constant 0 : index
    %c0_1 = arith.constant 0 : index
    %0 = vector.load %arg1[%c0, %c0_0, %c0_1] : memref<1x256x48xf32, #tpu.memory_space<vmem>>, vector<1x256x48xf32>
    %1 = vector.shape_cast %0 : vector<1x256x48xf32> to vector<256x48xf32>
    %c0_2 = arith.constant 0 : index
    %c0_3 = arith.constant 0 : index
    %2 = vector.load %arg3[%c0_2, %c0_3] : memref<48x32xf32, #tpu.memory_space<vmem>>, vector<48x32xf32>
    %cst = arith.constant dense<0.000000e+00> : vector<256x32xf32>
    %3 = tpu.matmul %1, %2, %cst {dimension_numbers = #tpu.dot_dimension_numbers<[1], [0], [0], [1], [0, 0, 1, 1], [], []>} : vector<256x48xf32>, vector<48x32xf32>, vector<256x32xf32> -> vector<256x32xf32>
    %c0_4 = arith.constant 0 : index
    %c0_5 = arith.constant 0 : index
    %4 = vector.load %arg4[%c0_4, %c0_5] : memref<1x32xf32, #tpu.memory_space<vmem>>, vector<1x32xf32>
    %5 = vector.broadcast %4 : vector<1x32xf32> to vector<256x32xf32>
    %6 = arith.addf %3, %5 : vector<256x32xf32>
    %cst_6 = arith.constant 0.000000e+00 : f32
    %7 = vector.broadcast %cst_6 : f32 to vector<256x32xf32>
    %8 = arith.maximumf %6, %7 : vector<256x32xf32>
    %c0_7 = arith.constant 0 : index
    %c0_8 = arith.constant 0 : index
    %9 = vector.load %arg2[%c0_7, %c0_8] : memref<16x256xf32, #tpu.memory_space<vmem>>, vector<16x256xf32>
    %cst_9 = arith.constant dense<0.000000e+00> : vector<16x32xf32>
    %10 = tpu.matmul %9, %8, %cst_9 {dimension_numbers = #tpu.dot_dimension_numbers<[1], [0], [0], [1], [0, 0, 1, 1], [], []>} : vector<16x256xf32>, vector<256x32xf32>, vector<16x32xf32> -> vector<16x32xf32>
    %c0_10 = arith.constant 0 : index
    %c0_11 = arith.constant 0 : index
    %11 = vector.load %arg12[%c0_10, %c0_11] : memref<16x32xf32, #tpu.memory_space<vmem>>, vector<16x32xf32>
    tpu.vector_store %arg12[%c0_10, %c0_11], %10 {strides = array<i32>} : memref<16x32xf32, #tpu.memory_space<vmem>>, vector<16x32xf32>,
    %c0_12 = arith.constant 0 : index
    %c0_13 = arith.constant 0 : index
    %12 = vector.load %arg12[%c0_12, %c0_13] : memref<16x32xf32, #tpu.memory_space<vmem>>, vector<14x32xf32>
    %c0_14 = arith.constant 0 : index
    %c0_15 = arith.constant 0 : index
    %c0_16 = arith.constant 0 : index
    %13 = vector.load %arg5[%c0_14, %c0_15, %c0_16] : memref<3x32x32xf32, #tpu.memory_space<vmem>>, vector<1x32x32xf32>
    %14 = vector.shape_cast %13 : vector<1x32x32xf32> to vector<32x32xf32>
    %cst_17 = arith.constant dense<0.000000e+00> : vector<14x32xf32>
    %15 = tpu.matmul %12, %14, %cst_17 {dimension_numbers = #tpu.dot_dimension_numbers<[1], [0], [0], [1], [0, 0, 1, 1], [], []>} : vector<14x32xf32>, vector<32x32xf32>, vector<14x32xf32> -> vector<14x32xf32>
    %c1 = arith.constant 1 : index
    %c0_18 = arith.constant 0 : index
    %16 = vector.load %arg12[%c1, %c0_18] : memref<16x32xf32, #tpu.memory_space<vmem>>, vector<14x32xf32>
    %c1_19 = arith.constant 1 : index
    %c0_20 = arith.constant 0 : index
    %c0_21 = arith.constant 0 : index
    %17 = vector.load %arg5[%c1_19, %c0_20, %c0_21] : memref<3x32x32xf32, #tpu.memory_space<vmem>>, vector<1x32x32xf32>
    %18 = vector.shape_cast %17 : vector<1x32x32xf32> to vector<32x32xf32>
    %cst_22 = arith.constant dense<0.000000e+00> : vector<14x32xf32>
    %19 = tpu.matmul %16, %18, %cst_22 {dimension_numbers = #tpu.dot_dimension_numbers<[1], [0], [0], [1], [0, 0, 1, 1], [], []>} : vector<14x32xf32>, vector<32x32xf32>, vector<14x32xf32> -> vector<14x32xf32>
    %20 = arith.addf %15, %19 : vector<14x32xf32>
    %c2 = arith.constant 2 : index
    %c0_23 = arith.constant 0 : index
    %21 = vector.load %arg12[%c2, %c0_23] : memref<16x32xf32, #tpu.memory_space<vmem>>, vector<14x32xf32>
    %c2_24 = arith.constant 2 : index
    %c0_25 = arith.constant 0 : index
    %c0_26 = arith.constant 0 : index
    %22 = vector.load %arg5[%c2_24, %c0_25, %c0_26] : memref<3x32x32xf32, #tpu.memory_space<vmem>>, vector<1x32x32xf32>
    %23 = vector.shape_cast %22 : vector<1x32x32xf32> to vector<32x32xf32>
    %cst_27 = arith.constant dense<0.000000e+00> : vector<14x32xf32>
    %24 = tpu.matmul %21, %23, %cst_27 {dimension_numbers = #tpu.dot_dimension_numbers<[1], [0], [0], [1], [0, 0, 1, 1], [], []>} : vector<14x32xf32>, vector<32x32xf32>, vector<14x32xf32> -> vector<14x32xf32>
    %25 = arith.addf %20, %24 : vector<14x32xf32>
    %c0_28 = arith.constant 0 : index
    %c0_29 = arith.constant 0 : index
    %26 = vector.load %arg6[%c0_28, %c0_29] : memref<1x32xf32, #tpu.memory_space<vmem>>, vector<1x32xf32>
    %27 = vector.broadcast %26 : vector<1x32xf32> to vector<14x32xf32>
    %28 = arith.mulf %25, %27 : vector<14x32xf32>
    %c0_30 = arith.constant 0 : index
    %c0_31 = arith.constant 0 : index
    %29 = vector.load %arg7[%c0_30, %c0_31] : memref<1x32xf32, #tpu.memory_space<vmem>>, vector<1x32xf32>
    %30 = vector.broadcast %29 : vector<1x32xf32> to vector<14x32xf32>
    %31 = arith.addf %28, %30 : vector<14x32xf32>
    %cst_32 = arith.constant 0.000000e+00 : f32
    %32 = vector.broadcast %cst_32 : f32 to vector<14x32xf32>
    %33 = arith.maximumf %31, %32 : vector<14x32xf32>
    %c0_33 = arith.constant 0 : index
    %c0_34 = arith.constant 0 : index
    %34 = vector.load %arg13[%c0_33, %c0_34] : memref<14x32xf32, #tpu.memory_space<vmem>>, vector<14x32xf32>
    tpu.vector_store %arg13[%c0_33, %c0_34], %33 {strides = array<i32>} : memref<14x32xf32, #tpu.memory_space<vmem>>, vector<14x32xf32>,
    %c0_35 = arith.constant 0 : index
    %c0_36 = arith.constant 0 : index
    %35 = tpu.strided_load %arg13[%c0_35, %c0_36] {strides = array<i32: 2, 1>} : memref<14x32xf32, #tpu.memory_space<vmem>>, vector<7x32xf32>
    %c1_37 = arith.constant 1 : index
    %c0_38 = arith.constant 0 : index
    %36 = tpu.strided_load %arg13[%c1_37, %c0_38] {strides = array<i32: 2, 1>} : memref<14x32xf32, #tpu.memory_space<vmem>>, vector<7x32xf32>
    %37 = arith.maximumf %35, %36 : vector<7x32xf32>
    %c0_39 = arith.constant 0 : index
    %c0_40 = arith.constant 0 : index
    %38 = vector.load %arg14[%c0_39, %c0_40] : memref<7x32xf32, #tpu.memory_space<vmem>>, vector<7x32xf32>
    tpu.vector_store %arg14[%c0_39, %c0_40], %37 {strides = array<i32>} : memref<7x32xf32, #tpu.memory_space<vmem>>, vector<7x32xf32>,
    %c0_41 = arith.constant 0 : index
    %c0_42 = arith.constant 0 : index
    %39 = vector.load %arg14[%c0_41, %c0_42] : memref<7x32xf32, #tpu.memory_space<vmem>>, vector<5x32xf32>
    %c0_43 = arith.constant 0 : index
    %c0_44 = arith.constant 0 : index
    %c0_45 = arith.constant 0 : index
    %40 = vector.load %arg8[%c0_43, %c0_44, %c0_45] : memref<3x32x32xf32, #tpu.memory_space<vmem>>, vector<1x32x32xf32>
    %41 = vector.shape_cast %40 : vector<1x32x32xf32> to vector<32x32xf32>
    %cst_46 = arith.constant dense<0.000000e+00> : vector<5x32xf32>
    %42 = tpu.matmul %39, %41, %cst_46 {dimension_numbers = #tpu.dot_dimension_numbers<[1], [0], [0], [1], [0, 0, 1, 1], [], []>} : vector<5x32xf32>, vector<32x32xf32>, vector<5x32xf32> -> vector<5x32xf32>
    %c1_47 = arith.constant 1 : index
    %c0_48 = arith.constant 0 : index
    %43 = vector.load %arg14[%c1_47, %c0_48] : memref<7x32xf32, #tpu.memory_space<vmem>>, vector<5x32xf32>
    %c1_49 = arith.constant 1 : index
    %c0_50 = arith.constant 0 : index
    %c0_51 = arith.constant 0 : index
    %44 = vector.load %arg8[%c1_49, %c0_50, %c0_51] : memref<3x32x32xf32, #tpu.memory_space<vmem>>, vector<1x32x32xf32>
    %45 = vector.shape_cast %44 : vector<1x32x32xf32> to vector<32x32xf32>
    %cst_52 = arith.constant dense<0.000000e+00> : vector<5x32xf32>
    %46 = tpu.matmul %43, %45, %cst_52 {dimension_numbers = #tpu.dot_dimension_numbers<[1], [0], [0], [1], [0, 0, 1, 1], [], []>} : vector<5x32xf32>, vector<32x32xf32>, vector<5x32xf32> -> vector<5x32xf32>
    %47 = arith.addf %42, %46 : vector<5x32xf32>
    %c2_53 = arith.constant 2 : index
    %c0_54 = arith.constant 0 : index
    %48 = vector.load %arg14[%c2_53, %c0_54] : memref<7x32xf32, #tpu.memory_space<vmem>>, vector<5x32xf32>
    %c2_55 = arith.constant 2 : index
    %c0_56 = arith.constant 0 : index
    %c0_57 = arith.constant 0 : index
    %49 = vector.load %arg8[%c2_55, %c0_56, %c0_57] : memref<3x32x32xf32, #tpu.memory_space<vmem>>, vector<1x32x32xf32>
    %50 = vector.shape_cast %49 : vector<1x32x32xf32> to vector<32x32xf32>
    %cst_58 = arith.constant dense<0.000000e+00> : vector<5x32xf32>
    %51 = tpu.matmul %48, %50, %cst_58 {dimension_numbers = #tpu.dot_dimension_numbers<[1], [0], [0], [1], [0, 0, 1, 1], [], []>} : vector<5x32xf32>, vector<32x32xf32>, vector<5x32xf32> -> vector<5x32xf32>
    %52 = arith.addf %47, %51 : vector<5x32xf32>
    %c0_59 = arith.constant 0 : index
    %c0_60 = arith.constant 0 : index
    %53 = vector.load %arg9[%c0_59, %c0_60] : memref<1x32xf32, #tpu.memory_space<vmem>>, vector<1x32xf32>
    %54 = vector.broadcast %53 : vector<1x32xf32> to vector<5x32xf32>
    %55 = arith.mulf %52, %54 : vector<5x32xf32>
    %c0_61 = arith.constant 0 : index
    %c0_62 = arith.constant 0 : index
    %56 = vector.load %arg10[%c0_61, %c0_62] : memref<1x32xf32, #tpu.memory_space<vmem>>, vector<1x32xf32>
    %57 = vector.broadcast %56 : vector<1x32xf32> to vector<5x32xf32>
    %58 = arith.addf %55, %57 : vector<5x32xf32>
    %cst_63 = arith.constant 0.000000e+00 : f32
    %59 = vector.broadcast %cst_63 : f32 to vector<5x32xf32>
    %60 = arith.maximumf %58, %59 : vector<5x32xf32>
    %c0_64 = arith.constant 0 : index
    %c0_65 = arith.constant 0 : index
    %61 = vector.load %arg15[%c0_64, %c0_65] : memref<5x32xf32, #tpu.memory_space<vmem>>, vector<5x32xf32>
    tpu.vector_store %arg15[%c0_64, %c0_65], %60 {strides = array<i32>} : memref<5x32xf32, #tpu.memory_space<vmem>>, vector<5x32xf32>,
    %c0_66 = arith.constant 0 : index
    %c0_67 = arith.constant 0 : index
    %62 = tpu.strided_load %arg15[%c0_66, %c0_67] {strides = array<i32: 2, 1>} : memref<5x32xf32, #tpu.memory_space<vmem>>, vector<2x32xf32>
    %c1_68 = arith.constant 1 : index
    %c0_69 = arith.constant 0 : index
    %63 = tpu.strided_load %arg15[%c1_68, %c0_69] {strides = array<i32: 2, 1>} : memref<5x32xf32, #tpu.memory_space<vmem>>, vector<2x32xf32>
    %64 = arith.maximumf %62, %63 : vector<2x32xf32>
    %c0_70 = arith.constant 0 : index
    %c0_71 = arith.constant 0 : index
    %c0_72 = arith.constant 0 : index
    %65 = vector.load %arg11[%c0_70, %c0_71, %c0_72] : memref<1x2x32xf32, #tpu.memory_space<vmem>>, vector<1x2x32xf32>
    %66 = vector.shape_cast %65 : vector<1x2x32xf32> to vector<2x32xf32>
    %67 = vector.shape_cast %64 : vector<2x32xf32> to vector<1x2x32xf32>
    tpu.vector_store %arg11[%c0_70, %c0_71, %c0_72], %67 {strides = array<i32>} : memref<1x2x32xf32, #tpu.memory_space<vmem>>, vector<1x2x32xf32>,
    return
  }
  func.func @transform_0(%arg0: i32) -> (i32, i32, i32) {
    %c0_i32 = arith.constant 0 : i32
    %c0_i32_0 = arith.constant 0 : i32
    %c0_i32_1 = arith.constant 0 : i32
    return %arg0, %c0_i32, %c0_i32_0 : i32, i32, i32
  }
  func.func @transform_1(%arg0: i32) -> (i32, i32) {
    %c0_i32 = arith.constant 0 : i32
    %c0_i32_0 = arith.constant 0 : i32
    %c0_i32_1 = arith.constant 0 : i32
    return %c0_i32, %c0_i32_0 : i32, i32
  }
  func.func @transform_2(%arg0: i32) -> (i32, i32) {
    %c0_i32 = arith.constant 0 : i32
    %c0_i32_0 = arith.constant 0 : i32
    %c0_i32_1 = arith.constant 0 : i32
    return %c0_i32, %c0_i32_0 : i32, i32
  }
  func.func @transform_3(%arg0: i32) -> (i32, i32) {
    %c0_i32 = arith.constant 0 : i32
    %c0_i32_0 = arith.constant 0 : i32
    %c0_i32_1 = arith.constant 0 : i32
    return %c0_i32, %c0_i32_0 : i32, i32
  }
  func.func @transform_4(%arg0: i32) -> (i32, i32, i32) {
    %c0_i32 = arith.constant 0 : i32
    %c0_i32_0 = arith.constant 0 : i32
    %c0_i32_1 = arith.constant 0 : i32
    %c0_i32_2 = arith.constant 0 : i32
    return %c0_i32, %c0_i32_0, %c0_i32_1 : i32, i32, i32
  }
  func.func @transform_5(%arg0: i32) -> (i32, i32) {
    %c0_i32 = arith.constant 0 : i32
    %c0_i32_0 = arith.constant 0 : i32
    %c0_i32_1 = arith.constant 0 : i32
    return %c0_i32, %c0_i32_0 : i32, i32
  }
  func.func @transform_6(%arg0: i32) -> (i32, i32) {
    %c0_i32 = arith.constant 0 : i32
    %c0_i32_0 = arith.constant 0 : i32
    %c0_i32_1 = arith.constant 0 : i32
    return %c0_i32, %c0_i32_0 : i32, i32
  }
  func.func @transform_7(%arg0: i32) -> (i32, i32, i32) {
    %c0_i32 = arith.constant 0 : i32
    %c0_i32_0 = arith.constant 0 : i32
    %c0_i32_1 = arith.constant 0 : i32
    %c0_i32_2 = arith.constant 0 : i32
    return %c0_i32, %c0_i32_0, %c0_i32_1 : i32, i32, i32
  }
  func.func @transform_8(%arg0: i32) -> (i32, i32) {
    %c0_i32 = arith.constant 0 : i32
    %c0_i32_0 = arith.constant 0 : i32
    %c0_i32_1 = arith.constant 0 : i32
    return %c0_i32, %c0_i32_0 : i32, i32
  }
  func.func @transform_9(%arg0: i32) -> (i32, i32) {
    %c0_i32 = arith.constant 0 : i32
    %c0_i32_0 = arith.constant 0 : i32
    %c0_i32_1 = arith.constant 0 : i32
    return %c0_i32, %c0_i32_0 : i32, i32
  }
  func.func @transform_10(%arg0: i32) -> (i32, i32, i32) {
    %c0_i32 = arith.constant 0 : i32
    %c0_i32_0 = arith.constant 0 : i32
    %c0_i32_1 = arith.constant 0 : i32
    return %arg0, %c0_i32, %c0_i32_0 : i32, i32, i32
  }
}

</mosaic_0001>

<llo_original>
// kernel: tpu_custom_call.1
$region0: #{tpu_custom_call.1}
  #allocation0 [shape = 'u32[]', space=smem, size = 0x4, offset = 0x4, fixed_abs, tag = 'smem constant byte address 0x4 - core index']
  #allocation1 [shape = 'u32[144,128]{1,0:T(1,128)}', space=vmem, size = 0x12000, scoped, tag = 'internal scratch']
  #allocation2 [shape = 'f32[16,32]{1,0:T(8,128)}', space=vmem, size = 0x2000, scoped, tag = 'scratch operand']
  #allocation3 [shape = 'f32[14,32]{1,0:T(8,128)}', space=vmem, size = 0x2000, scoped, tag = 'scratch operand']
  #allocation4 [shape = 'f32[7,32]{1,0:T(8,128)}', space=vmem, size = 0x1000, scoped, tag = 'scratch operand']
  #allocation5 [shape = 'f32[5,32]{1,0:T(8,128)}', space=vmem, size = 0x1000, scoped, tag = 'scratch operand']
  %s0 = inlined_call_operand.vmem [shape: f32[2,256,48], index: 0, kind: input, shape index: {}]
  %s1 = inlined_call_operand.vmem [shape: f32[16,256], index: 1, kind: input, shape index: {}]
  %s2 = inlined_call_operand.vmem [shape: f32[48,32], index: 2, kind: input, shape index: {}]
  %s3 = inlined_call_operand.vmem [shape: f32[1,32], index: 3, kind: input, shape index: {}]
  %s4 = inlined_call_operand.vmem [shape: f32[3,32,32], index: 4, kind: input, shape index: {}]
  %s5 = inlined_call_operand.vmem [shape: f32[1,32], index: 5, kind: input, shape index: {}]
  %s6 = inlined_call_operand.vmem [shape: f32[1,32], index: 6, kind: input, shape index: {}]
  %s7 = inlined_call_operand.vmem [shape: f32[3,32,32], index: 7, kind: input, shape index: {}]
  %s8 = inlined_call_operand.vmem [shape: f32[1,32], index: 8, kind: input, shape index: {}]
  %s9 = inlined_call_operand.vmem [shape: f32[1,32], index: 9, kind: input, shape index: {}]
  %s10 = inlined_call_operand.hbm [shape: f32[2,2,32], index: 10, kind: output, shape index: {}]
  %s11 = sld [smem:[#allocation0]]
  $region73: #{tpu_custom_call.1} parent=0
    _
  %s13 = ssub.s32 1, %s11
  %s14 = scalar_select 0, %s13, %s11
  $region1: #{tpu_custom_call.1} parent=0
    #allocation6 [shape = 'u8[2048]{0}', space=vmem, size = 0x800, scoped, tag = 'output window, operand 0']
    #allocation7 [shape = 's32[2]{0}', space=sflag, size = 0x8, scoped, tag = 'scoped memory for tpu_custom_call.1']
    %15 = vsyncpa [#allocation7], 0
    %s16 = scalar_lea.sflag [#allocation7], 1
    %17 = vsyncpa %s16, 0
    loop: start=0, step=1, limit=4
    $region2: #{tpu_custom_call.1} parent=1 // loop_pre_header
      _
    $region3: #{tpu_custom_call.1} parent=1 // loop_header
      %s19 = sphi 0, %s23
      %p20 = scmp.ge.s32.totalorder %s19, 4
      %s29 = sphi 0, %s31
      %s32 = sphi 0, %s29
      %s33 = sphi 0, %s32
      %s49 = sphi 0, %s33
      %s53 = sphi 0, %s53
      %s55 = sphi 0, %s53
      %s56 = sphi 0, %s55
      %s70 = sphi 0, %s56
      %s74 = sphi 0, %s74
      %s76 = sphi 0, %s74
      %s77 = sphi 0, %s76
      %s91 = sphi 0, %s77
      %s95 = sphi 0, %s95
      %s97 = sphi 0, %s95
      %s98 = sphi 0, %s97
      %s112 = sphi 0, %s98
      %s116 = sphi 0, %s116
      %s118 = sphi 0, %s116
      %s119 = sphi 0, %s118
      %s133 = sphi 0, %s119
      %s137 = sphi 0, %s137
      %s139 = sphi 0, %s137
      %s140 = sphi 0, %s139
      %s154 = sphi 0, %s140
      %s158 = sphi 0, %s158
      %s160 = sphi 0, %s158
      %s161 = sphi 0, %s160
      %s175 = sphi 0, %s161
      %s179 = sphi 0, %s179
      %s181 = sphi 0, %s179
      %s182 = sphi 0, %s181
      %s196 = sphi 0, %s182
      %s200 = sphi 0, %s200
      %s202 = sphi 0, %s200
      %s203 = sphi 0, %s202
      %s217 = sphi 0, %s203
      %s221 = sphi 0, %s221
      %s223 = sphi 0, %s221
      %s224 = sphi 0, %s223
      %s238 = sphi 0, %s224
      %s244 = sphi 0, %s246
      %s247 = sphi 0, %s244
      %s248 = sphi 0, %s247
      %s264 = sphi 0, %s248
    $region4: #{tpu_custom_call.1} parent=1 // loop_header_branch
      %22 = sbr.rel (%p20) target = $region8
    $region5: #{tpu_custom_call.1} parent=1 // loop_body
      %s24 = ssub.s32 %s19, 1
      %s25 = ssub.s32 %s19, 2
      %s26 = sadd.s32 %s19, 1
      %s27 = ssub.s32 %s19, %s26
      %p28 = scmp.eq.s32.totalorder %s27, 0
      %s30 = sadd.s32 %s29, 1
      %s31 = scalar_select %p28, %s29, %s30
      %p34 = pneg %p28
      %p35 = scmp.eq.s32.totalorder %s19, 1
      %p36 = por %p34, %p35
      %p37 = scmp.ne.s32.totalorder %s29, %s32
      %p38 = scmp.eq.s32.totalorder %s19, 0
      %p39 = por %p37, %p38
      %p40 = scmp.ne.s32.totalorder %s29, %s32
      %p41 = scmp.eq.s32.totalorder %s24, 1
      %p42 = por %p40, %p41
      %p43 = scmp.ne.s32.totalorder %s32, %s33
      %p44 = scmp.eq.s32.totalorder %s24, 0
      %p45 = por %p43, %p44
      %p46 = scmp.ne.s32.totalorder %s32, %s33
      %p47 = scmp.eq.s32.totalorder %s25, 1
      %p48 = por %p46, %p47
      %p50 = scmp.ne.s32.totalorder %s33, %s49
      %p51 = scmp.eq.s32.totalorder %s25, 0
      %p52 = por %p50, %p51
      %s54 = sadd.s32 %s53, 1
      %p57 = scmp.eq.s32.totalorder %s19, 1
      %p58 = scmp.ne.s32.totalorder %s53, %s55
      %p59 = scmp.eq.s32.totalorder %s19, 0
      %p60 = por %p58, %p59
      %p61 = scmp.ne.s32.totalorder %s53, %s55
      %p62 = scmp.eq.s32.totalorder %s24, 1
      %p63 = por %p61, %p62
      %p64 = scmp.ne.s32.totalorder %s55, %s56
      %p65 = scmp.eq.s32.totalorder %s24, 0
      %p66 = por %p64, %p65
      %p67 = scmp.ne.s32.totalorder %s55, %s56
      %p68 = scmp.eq.s32.totalorder %s25, 1
      %p69 = por %p67, %p68
      %p71 = scmp.ne.s32.totalorder %s56, %s70
      %p72 = scmp.eq.s32.totalorder %s25, 0
      %p73 = por %p71, %p72
      %s75 = sadd.s32 %s74, 1
      %p78 = scmp.eq.s32.totalorder %s19, 1
      %p79 = scmp.ne.s32.totalorder %s74, %s76
      %p80 = scmp.eq.s32.totalorder %s19, 0
      %p81 = por %p79, %p80
      %p82 = scmp.ne.s32.totalorder %s74, %s76
      %p83 = scmp.eq.s32.totalorder %s24, 1
      %p84 = por %p82, %p83
      %p85 = scmp.ne.s32.totalorder %s76, %s77
      %p86 = scmp.eq.s32.totalorder %s24, 0
      %p87 = por %p85, %p86
      %p88 = scmp.ne.s32.totalorder %s76, %s77
      %p89 = scmp.eq.s32.totalorder %s25, 1
      %p90 = por %p88, %p89
      %p92 = scmp.ne.s32.totalorder %s77, %s91
      %p93 = scmp.eq.s32.totalorder %s25, 0
      %p94 = por %p92, %p93
      %s96 = sadd.s32 %s95, 1
      %p99 = scmp.eq.s32.totalorder %s19, 1
      %p100 = scmp.ne.s32.totalorder %s95, %s97
      %p101 = scmp.eq.s32.totalorder %s19, 0
      %p102 = por %p100, %p101
      %p103 = scmp.ne.s32.totalorder %s95, %s97
      %p104 = scmp.eq.s32.totalorder %s24, 1
      %p105 = por %p103, %p104
      %p106 = scmp.ne.s32.totalorder %s97, %s98
      %p107 = scmp.eq.s32.totalorder %s24, 0
      %p108 = por %p106, %p107
      %p109 = scmp.ne.s32.totalorder %s97, %s98
      %p110 = scmp.eq.s32.totalorder %s25, 1
      %p111 = por %p109, %p110
      %p113 = scmp.ne.s32.totalorder %s98, %s112
      %p114 = scmp.eq.s32.totalorder %s25, 0
      %p115 = por %p113, %p114
      %s117 = sadd.s32 %s116, 1
      %p120 = scmp.eq.s32.totalorder %s19, 1
      %p121 = scmp.ne.s32.totalorder %s116, %s118
      %p122 = scmp.eq.s32.totalorder %s19, 0
      %p123 = por %p121, %p122
      %p124 = scmp.ne.s32.totalorder %s116, %s118
      %p125 = scmp.eq.s32.totalorder %s24, 1
      %p126 = por %p124, %p125
      %p127 = scmp.ne.s32.totalorder %s118, %s119
      %p128 = scmp.eq.s32.totalorder %s24, 0
      %p129 = por %p127, %p128
      %p130 = scmp.ne.s32.totalorder %s118, %s119
      %p131 = scmp.eq.s32.totalorder %s25, 1
      %p132 = por %p130, %p131
      %p134 = scmp.ne.s32.totalorder %s119, %s133
      %p135 = scmp.eq.s32.totalorder %s25, 0
      %p136 = por %p134, %p135
      %s138 = sadd.s32 %s137, 1
      %p141 = scmp.eq.s32.totalorder %s19, 1
      %p142 = scmp.ne.s32.totalorder %s137, %s139
      %p143 = scmp.eq.s32.totalorder %s19, 0
      %p144 = por %p142, %p143
      %p145 = scmp.ne.s32.totalorder %s137, %s139
      %p146 = scmp.eq.s32.totalorder %s24, 1
      %p147 = por %p145, %p146
      %p148 = scmp.ne.s32.totalorder %s139, %s140
      %p149 = scmp.eq.s32.totalorder %s24, 0
      %p150 = por %p148, %p149
      %p151 = scmp.ne.s32.totalorder %s139, %s140
      %p152 = scmp.eq.s32.totalorder %s25, 1
      %p153 = por %p151, %p152
      %p155 = scmp.ne.s32.totalorder %s140, %s154
      %p156 = scmp.eq.s32.totalorder %s25, 0
      %p157 = por %p155, %p156
      %s159 = sadd.s32 %s158, 1
      %p162 = scmp.eq.s32.totalorder %s19, 1
      %p163 = scmp.ne.s32.totalorder %s158, %s160
      %p164 = scmp.eq.s32.totalorder %s19, 0
      %p165 = por %p163, %p164
      %p166 = scmp.ne.s32.totalorder %s158, %s160
      %p167 = scmp.eq.s32.totalorder %s24, 1
      %p168 = por %p166, %p167
      %p169 = scmp.ne.s32.totalorder %s160, %s161
      %p170 = scmp.eq.s32.totalorder %s24, 0
      %p171 = por %p169, %p170
      %p172 = scmp.ne.s32.totalorder %s160, %s161
      %p173 = scmp.eq.s32.totalorder %s25, 1
      %p174 = por %p172, %p173
      %p176 = scmp.ne.s32.totalorder %s161, %s175
      %p177 = scmp.eq.s32.totalorder %s25, 0
      %p178 = por %p176, %p177
      %s180 = sadd.s32 %s179, 1
      %p183 = scmp.eq.s32.totalorder %s19, 1
      %p184 = scmp.ne.s32.totalorder %s179, %s181
      %p185 = scmp.eq.s32.totalorder %s19, 0
      %p186 = por %p184, %p185
      %p187 = scmp.ne.s32.totalorder %s179, %s181
      %p188 = scmp.eq.s32.totalorder %s24, 1
      %p189 = por %p187, %p188
      %p190 = scmp.ne.s32.totalorder %s181, %s182
      %p191 = scmp.eq.s32.totalorder %s24, 0
      %p192 = por %p190, %p191
      %p193 = scmp.ne.s32.totalorder %s181, %s182
      %p194 = scmp.eq.s32.totalorder %s25, 1
      %p195 = por %p193, %p194
      %p197 = scmp.ne.s32.totalorder %s182, %s196
      %p198 = scmp.eq.s32.totalorder %s25, 0
      %p199 = por %p197, %p198
      %s201 = sadd.s32 %s200, 1
      %p204 = scmp.eq.s32.totalorder %s19, 1
      %p205 = scmp.ne.s32.totalorder %s200, %s202
      %p206 = scmp.eq.s32.totalorder %s19, 0
      %p207 = por %p205, %p206
      %p208 = scmp.ne.s32.totalorder %s200, %s202
      %p209 = scmp.eq.s32.totalorder %s24, 1
      %p210 = por %p208, %p209
      %p211 = scmp.ne.s32.totalorder %s202, %s203
      %p212 = scmp.eq.s32.totalorder %s24, 0
      %p213 = por %p211, %p212
      %p214 = scmp.ne.s32.totalorder %s202, %s203
      %p215 = scmp.eq.s32.totalorder %s25, 1
      %p216 = por %p214, %p215
      %p218 = scmp.ne.s32.totalorder %s203, %s217
      %p219 = scmp.eq.s32.totalorder %s25, 0
      %p220 = por %p218, %p219
      %s222 = sadd.s32 %s221, 1
      %p225 = scmp.eq.s32.totalorder %s19, 1
      %p226 = scmp.ne.s32.totalorder %s221, %s223
      %p227 = scmp.eq.s32.totalorder %s19, 0
      %p228 = por %p226, %p227
      %p229 = scmp.ne.s32.totalorder %s221, %s223
      %p230 = scmp.eq.s32.totalorder %s24, 1
      %p231 = por %p229, %p230
      %p232 = scmp.ne.s32.totalorder %s223, %s224
      %p233 = scmp.eq.s32.totalorder %s24, 0
      %p234 = por %p232, %p233
      %p235 = scmp.ne.s32.totalorder %s223, %s224
      %p236 = scmp.eq.s32.totalorder %s25, 1
      %p237 = por %p235, %p236
      %p239 = scmp.ne.s32.totalorder %s224, %s238
      %p240 = scmp.eq.s32.totalorder %s25, 0
      %p241 = por %p239, %p240
      %s242 = ssub.s32 %s19, %s26
      %p243 = scmp.eq.s32.totalorder %s242, 0
      %s245 = sadd.s32 %s244, 1
      %s246 = scalar_select %p243, %s244, %s245
      %p249 = pneg %p243
      %p250 = scmp.eq.s32.totalorder %s19, 1
      %p251 = por %p249, %p250
      %p252 = scmp.ne.s32.totalorder %s244, %s247
      %p253 = scmp.eq.s32.totalorder %s19, 0
      %p254 = por %p252, %p253
      %p255 = scmp.ne.s32.totalorder %s244, %s247
      %p256 = scmp.eq.s32.totalorder %s24, 1
      %p257 = por %p255, %p256
      %p258 = scmp.ne.s32.totalorder %s247, %s248
      %p259 = scmp.eq.s32.totalorder %s24, 0
      %p260 = por %p258, %p259
      %p261 = scmp.ne.s32.totalorder %s247, %s248
      %p262 = scmp.eq.s32.totalorder %s25, 1
      %p263 = por %p261, %p262
      %p265 = scmp.ne.s32.totalorder %s248, %s264
      %p266 = scmp.eq.s32.totalorder %s25, 0
      %p267 = por %p265, %p266
      %p268 = scmp.le.s32.totalorder 1, %s19
      %p269 = scmp.lt.s32.totalorder %s19, 3
      %p270 = pnand %p268, %p269
      %p271 = pneg %p270
      // Predicated region
      $region9: #{tpu_custom_call.1} parent=5 // pred_check
        _
      $region10: #{tpu_custom_call.1} parent=5 // pred_check_branch
        %273 = sbr.rel (%p270) target = $region12
      $region11: #{tpu_custom_call.1} parent=5 // pred_region
        %s274 = ssub.s32 %s19, 1
        // Predicated region
        $region13: #{tpu_custom_call.1} parent=11 // pred_check
          %p275 = pneg %p66
        $region14: #{tpu_custom_call.1} parent=11 // pred_check_branch
          %277 = sbr.rel (%p275) target = $region16
        $region15: #{tpu_custom_call.1} parent=11 // pred_region
          _
        $region16: #{tpu_custom_call.1} parent=11 // pred_fallthru
          _
        // Predicated region
        $region17: #{tpu_custom_call.1} parent=11 // pred_check
          %p278 = pneg %p87
        $region18: #{tpu_custom_call.1} parent=11 // pred_check_branch
          %280 = sbr.rel (%p278) target = $region20
        $region19: #{tpu_custom_call.1} parent=11 // pred_region
          _
        $region20: #{tpu_custom_call.1} parent=11 // pred_fallthru
          _
        // Predicated region
        $region21: #{tpu_custom_call.1} parent=11 // pred_check
          %p281 = pneg %p108
        $region22: #{tpu_custom_call.1} parent=11 // pred_check_branch
          %283 = sbr.rel (%p281) target = $region24
        $region23: #{tpu_custom_call.1} parent=11 // pred_region
          _
        $region24: #{tpu_custom_call.1} parent=11 // pred_fallthru
          _
        // Predicated region
        $region25: #{tpu_custom_call.1} parent=11 // pred_check
          %p284 = pneg %p129
        $region26: #{tpu_custom_call.1} parent=11 // pred_check_branch
          %286 = sbr.rel (%p284) target = $region28
        $region27: #{tpu_custom_call.1} parent=11 // pred_region
          _
        $region28: #{tpu_custom_call.1} parent=11 // pred_fallthru
          _
        // Predicated region
        $region29: #{tpu_custom_call.1} parent=11 // pred_check
          %p287 = pneg %p150
        $region30: #{tpu_custom_call.1} parent=11 // pred_check_branch
          %289 = sbr.rel (%p287) target = $region32
        $region31: #{tpu_custom_call.1} parent=11 // pred_region
          _
        $region32: #{tpu_custom_call.1} parent=11 // pred_fallthru
          _
        // Predicated region
        $region33: #{tpu_custom_call.1} parent=11 // pred_check
          %p290 = pneg %p171
        $region34: #{tpu_custom_call.1} parent=11 // pred_check_branch
          %292 = sbr.rel (%p290) target = $region36
        $region35: #{tpu_custom_call.1} parent=11 // pred_region
          _
        $region36: #{tpu_custom_call.1} parent=11 // pred_fallthru
          _
        // Predicated region
        $region37: #{tpu_custom_call.1} parent=11 // pred_check
          %p293 = pneg %p192
        $region38: #{tpu_custom_call.1} parent=11 // pred_check_branch
          %295 = sbr.rel (%p293) target = $region40
        $region39: #{tpu_custom_call.1} parent=11 // pred_region
          _
        $region40: #{tpu_custom_call.1} parent=11 // pred_fallthru
          _
        // Predicated region
        $region41: #{tpu_custom_call.1} parent=11 // pred_check
          %p296 = pneg %p213
        $region42: #{tpu_custom_call.1} parent=11 // pred_check_branch
          %298 = sbr.rel (%p296) target = $region44
        $region43: #{tpu_custom_call.1} parent=11 // pred_region
          _
        $region44: #{tpu_custom_call.1} parent=11 // pred_fallthru
          _
        // Predicated region
        $region45: #{tpu_custom_call.1} parent=11 // pred_check
          %p299 = pneg %p234
        $region46: #{tpu_custom_call.1} parent=11 // pred_check_branch
          %301 = sbr.rel (%p299) target = $region48
        $region47: #{tpu_custom_call.1} parent=11 // pred_region
          _
        $region48: #{tpu_custom_call.1} parent=11 // pred_fallthru
          _
      $region12: #{tpu_custom_call.1} parent=5 // pred_fallthru
        _
      %p302 = scmp.lt.s32.totalorder %s19, 2
      // Predicated region
      $region49: #{tpu_custom_call.1} parent=5 // pred_check
        %p303 = pneg %p302
      $region50: #{tpu_custom_call.1} parent=5 // pred_check_branch
        %305 = sbr.rel (%p303) target = $region52
      $region51: #{tpu_custom_call.1} parent=5 // pred_region
        // Predicated region
        $region53: #{tpu_custom_call.1} parent=51 // pred_check
          %p306 = pneg %p39
        $region54: #{tpu_custom_call.1} parent=51 // pred_check_branch
          %308 = sbr.rel (%p306) target = $region56
        $region55: #{tpu_custom_call.1} parent=51 // pred_region
          %p309 = scmp.lt.s32.totalorder %s19, 1
          %s310 = scalar_select %p309, %s19, 1
          %s311 = smul.addr %s310, 32
          %s312 = smul.addr %s311, 8
          %s313 = scalar_lea.vmem %s0, %s312
        $region56: #{tpu_custom_call.1} parent=51 // pred_fallthru
          _
      $region52: #{tpu_custom_call.1} parent=5 // pred_fallthru
        _
      %p314 = scmp.le.s32.totalorder 1, %s19
      %p315 = scmp.lt.s32.totalorder %s19, 3
      %p316 = pnand %p314, %p315
      %p317 = pneg %p316
      // Predicated region
      $region57: #{tpu_custom_call.1} parent=5 // pred_check
        _
      $region58: #{tpu_custom_call.1} parent=5 // pred_check_branch
        %319 = sbr.rel (%p316) target = $region60
      $region59: #{tpu_custom_call.1} parent=5 // pred_region
        %s320 = ssub.s32 %s19, 1
        %p321 = scmp.lt.s32.totalorder %s24, 1
        %s322 = scalar_select %p321, %s24, 1
        %s323 = smul.addr %s322, 32
        %s324 = smul.addr %s323, 8
        %s325 = scalar_lea.vmem %s0, %s324
        %p326 = pneg %p45
        %p327 = pneg %p42
        %p328 = pneg %p66
        %p329 = pneg %p63
        %p330 = pneg %p87
        %p331 = pneg %p84
        %p332 = pneg %p108
        %p333 = pneg %p105
        %p334 = pneg %p129
        %p335 = pneg %p126
        %p336 = pneg %p150
        %p337 = pneg %p147
        %p338 = pneg %p171
        %p339 = pneg %p168
        %p340 = pneg %p192
        %p341 = pneg %p189
        %p342 = pneg %p213
        %p343 = pneg %p210
        %p344 = pneg %p234
        %p345 = pneg %p231
        %p346 = pneg %p260
        %p347 = pneg %p257
        %s348 = sand.u32 %s247, 1
        %s349 = scalar_lea.sflag [#allocation7], %s348
        %s350 = sand.u32 %s247, 1
        %s351 = smul.addr %s350, 2
        %s352 = scalar_lea.vmem [#allocation6], %s351
        %p353 = scmp.lt.s32.totalorder %s24, 1
        %s354 = scalar_select %p353, %s24, 1
        %s355 = smul.addr %s354, 32
        %s356 = smul.addr %s355, 8
        %s357 = scalar_lea.vmem %s0, %s356
        %v358 = vld [vmem:[%s357] sm:$0xff]
        %v359 = vld [vmem:[%s357 + $0x8] sm:$0xff]
        %v360 = vld [vmem:[%s357 + $0x10] sm:$0xff]
        %v361 = vld [vmem:[%s357 + $0x18] sm:$0xff]
        %v362 = vld [vmem:[%s357 + $0x20] sm:$0xff]
        %v363 = vld [vmem:[%s357 + $0x28] sm:$0xff]
        %v364 = vld [vmem:[%s357 + $0x30] sm:$0xff]
        %v365 = vld [vmem:[%s357 + $0x38] sm:$0xff]
        %v366 = vld [vmem:[%s357 + $0x40] sm:$0xff]
        %v367 = vld [vmem:[%s357 + $0x48] sm:$0xff]
        %v368 = vld [vmem:[%s357 + $0x50] sm:$0xff]
        %v369 = vld [vmem:[%s357 + $0x58] sm:$0xff]
        %v370 = vld [vmem:[%s357 + $0x60] sm:$0xff]
        %v371 = vld [vmem:[%s357 + $0x68] sm:$0xff]
        %v372 = vld [vmem:[%s357 + $0x70] sm:$0xff]
        %v373 = vld [vmem:[%s357 + $0x78] sm:$0xff]
        %v374 = vld [vmem:[%s357 + $0x80] sm:$0xff]
        %v375 = vld [vmem:[%s357 + $0x88] sm:$0xff]
        %v376 = vld [vmem:[%s357 + $0x90] sm:$0xff]
        %v377 = vld [vmem:[%s357 + $0x98] sm:$0xff]
        %v378 = vld [vmem:[%s357 + $0xa0] sm:$0xff]
        %v379 = vld [vmem:[%s357 + $0xa8] sm:$0xff]
        %v380 = vld [vmem:[%s357 + $0xb0] sm:$0xff]
        %v381 = vld [vmem:[%s357 + $0xb8] sm:$0xff]
        %v382 = vld [vmem:[%s357 + $0xc0] sm:$0xff]
        %v383 = vld [vmem:[%s357 + $0xc8] sm:$0xff]
        %v384 = vld [vmem:[%s357 + $0xd0] sm:$0xff]
        %v385 = vld [vmem:[%s357 + $0xd8] sm:$0xff]
        %v386 = vld [vmem:[%s357 + $0xe0] sm:$0xff]
        %v387 = vld [vmem:[%s357 + $0xe8] sm:$0xff]
        %v388 = vld [vmem:[%s357 + $0xf0] sm:$0xff]
        %v389 = vld [vmem:[%s357 + $0xf8] sm:$0xff]
        %v390 = vld [vmem:[%s2] sm:$0xff]
        %v391 = vld [vmem:[%s2 + $0x8] sm:$0xff]
        %v392 = vld [vmem:[%s2 + $0x10] sm:$0xff]
        %v393 = vld [vmem:[%s2 + $0x18] sm:$0xff]
        %v394 = vld [vmem:[%s2 + $0x20] sm:$0xff]
        %v395 = vld [vmem:[%s2 + $0x28] sm:$0xff]
        %v396 = vld [vmem:[%s3] sm:$0x1]
        %v398 = vlaneseq
        %v399 = vshrl.u32 %v398, 7
        %v400 = vsub.s32 0, %v399
        %v401 = vrot.slane %v396, %v400
        %vm403 = vcmask 392192
        %v405 = vsel %vm403, %v358, 0
        %v408 = vsel %vm403, %v359, 0
        %v411 = vsel %vm403, %v360, 0
        %v414 = vsel %vm403, %v361, 0
        %v417 = vsel %vm403, %v362, 0
        %v420 = vsel %vm403, %v363, 0
        %v423 = vsel %vm403, %v364, 0
        %v426 = vsel %vm403, %v365, 0
        %v429 = vsel %vm403, %v366, 0
        %v432 = vsel %vm403, %v367, 0
        %v435 = vsel %vm403, %v368, 0
        %v438 = vsel %vm403, %v369, 0
        %v441 = vsel %vm403, %v370, 0
        %v444 = vsel %vm403, %v371, 0
        %v447 = vsel %vm403, %v372, 0
        %v450 = vsel %vm403, %v373, 0
        %v453 = vsel %vm403, %v374, 0
        %v456 = vsel %vm403, %v375, 0
        %v459 = vsel %vm403, %v376, 0
        %v462 = vsel %vm403, %v377, 0
        %v465 = vsel %vm403, %v378, 0
        %v468 = vsel %vm403, %v379, 0
        %v471 = vsel %vm403, %v380, 0
        %v474 = vsel %vm403, %v381, 0
        %v477 = vsel %vm403, %v382, 0
        %v480 = vsel %vm403, %v383, 0
        %v483 = vsel %vm403, %v384, 0
        %v486 = vsel %vm403, %v385, 0
        %v489 = vsel %vm403, %v386, 0
        %v492 = vsel %vm403, %v387, 0
        %v495 = vsel %vm403, %v388, 0
        %v498 = vsel %vm403, %v389, 0
        %500 = vmatprep.subr.mxu0 0.0
        %501 = vmatpush1.msra.mxu0 %v390
        %502 = vmatprep.subr.mxu0 0.0
        %503 = vmatpush1.msra.mxu0 %v391
        %504 = vmatprep.subr.mxu0 0.0
        %505 = vmatpush1.msra.mxu0 %v392
        %506 = vmatprep.subr.mxu0 0.0
        %507 = vmatpush1.msra.mxu0 %v393
        %508 = vmatprep.subr.mxu0 0.0
        %509 = vmatpush1.msra.mxu0 %v394
        %510 = vmatprep.subr.mxu0 0.0
        %511 = vmatpush1.msra.mxu0 %v395
        %512 = vmatprep.subr.mxu0 0.0
        %513 = vmatpush1.msra.mxu0 0.0
        %514 = vmatprep.subr.mxu0 0.0
        %515 = vmatpush1.msra.mxu0 0.0
        %516 = vmatprep.subr.mxu0 0.0
        %517 = vmatpush1.msra.mxu0 0.0
        %518 = vmatprep.subr.mxu0 0.0
        %519 = vmatpush1.msra.mxu0 0.0
        %520 = vmatprep.subr.mxu0 0.0
        %521 = vmatpush1.msra.mxu0 0.0
        %522 = vmatprep.subr.mxu0 0.0
        %523 = vmatpush1.msra.mxu0 0.0
        %524 = vmatprep.subr.mxu0 0.0
        %525 = vmatpush1.msra.mxu0 0.0
        %526 = vmatprep.subr.mxu0 0.0
        %527 = vmatpush1.msra.mxu0 0.0
        %528 = vmatprep.subr.mxu0 0.0
        %529 = vmatpush1.msra.mxu0 0.0
        %530 = vmatprep.subr.mxu0 0.0
        %531 = vmatpush1.msra.mxu0 0.0
        %532 = vmatprep.subr.mxu0 0.0
        %533 = vmatpush1.msra.mxu0 0.0
        %534 = vmatprep.subr.mxu0 0.0
        %535 = vmatpush1.msra.mxu0 0.0
        %536 = vmatprep.subr.mxu0 0.0
        %537 = vmatpush1.msra.mxu0 0.0
        %538 = vmatprep.subr.mxu0 0.0
        %539 = vmatpush1.msra.mxu0 0.0
        %540 = vmatprep.subr.mxu0 0.0
        %541 = vmatpush1.msra.mxu0 0.0
        %542 = vmatprep.subr.mxu0 0.0
        %543 = vmatpush1.msra.mxu0 0.0
        %544 = vmatprep.subr.mxu0 0.0
        %545 = vmatpush1.msra.mxu0 0.0
        %546 = vmatprep.subr.mxu0 0.0
        %547 = vmatpush1.msra.mxu0 0.0
        %548 = vmatprep.subr.mxu0 0.0
        %549 = vmatpush1.msra.mxu0 0.0
        %550 = vmatprep.subr.mxu0 0.0
        %551 = vmatpush1.msra.mxu0 0.0
        %552 = vmatprep.subr.mxu0 0.0
        %553 = vmatpush1.msra.mxu0 0.0
        %554 = vmatprep.subr.mxu0 0.0
        %555 = vmatpush1.msra.mxu0 0.0
        %556 = vmatprep.subr.mxu0 0.0
        %557 = vmatpush1.msra.mxu0 0.0
        %558 = vmatprep.subr.mxu0 0.0
        %559 = vmatpush1.msra.mxu0 0.0
        %560 = vmatprep.subr.mxu0 0.0
        %561 = vmatpush1.msra.mxu0 0.0
        %562 = vmatprep.subr.mxu0 0.0
        %563 = vmatpush1.msra.mxu0 0.0
        %564 = vmatprep.mubr.f32.mxu0 0.0
        %565 = vmatmul.mubr.f32.gmra.mrb[0].mxu0 %v405
        %v566 = vpop.f32.mrb[0].mxu0
        %v567 = vadd.f32 %v401, %v566
        %v568 = vpop.f32.mrb[0].mxu0
        %569 = vmatprep.mubr.f32.mxu0 0.0
        %570 = vmatmul.mubr.f32.gmra.mrb[0].mxu0 %v408
        %v571 = vpop.f32.mrb[0].mxu0
        %v572 = vadd.f32 %v401, %v571
        %v573 = vpop.f32.mrb[0].mxu0
        %574 = vmatprep.mubr.f32.mxu0 0.0
        %575 = vmatmul.mubr.f32.gmra.mrb[0].mxu0 %v411
        %v576 = vpop.f32.mrb[0].mxu0
        %v577 = vadd.f32 %v401, %v576
        %v578 = vpop.f32.mrb[0].mxu0
        %579 = vmatprep.mubr.f32.mxu0 0.0
        %580 = vmatmul.mubr.f32.gmra.mrb[0].mxu0 %v414
        %v581 = vpop.f32.mrb[0].mxu0
        %v582 = vadd.f32 %v401, %v581
        %v583 = vpop.f32.mrb[0].mxu0
        %584 = vmatprep.mubr.f32.mxu0 0.0
        %585 = vmatmul.mubr.f32.gmra.mrb[0].mxu0 %v417
        %v586 = vpop.f32.mrb[0].mxu0
        %v587 = vadd.f32 %v401, %v586
        %v588 = vpop.f32.mrb[0].mxu0
        %589 = vmatprep.mubr.f32.mxu0 0.0
        %590 = vmatmul.mubr.f32.gmra.mrb[0].mxu0 %v420
        %v591 = vpop.f32.mrb[0].mxu0
        %v592 = vadd.f32 %v401, %v591
        %v593 = vpop.f32.mrb[0].mxu0
        %594 = vmatprep.mubr.f32.mxu0 0.0
        %595 = vmatmul.mubr.f32.gmra.mrb[0].mxu0 %v423
        %v596 = vpop.f32.mrb[0].mxu0
        %v597 = vadd.f32 %v401, %v596
        %v598 = vpop.f32.mrb[0].mxu0
        %599 = vmatprep.mubr.f32.mxu0 0.0
        %600 = vmatmul.mubr.f32.gmra.mrb[0].mxu0 %v426
        %v601 = vpop.f32.mrb[0].mxu0
        %v602 = vadd.f32 %v401, %v601
        %v603 = vpop.f32.mrb[0].mxu0
        %604 = vmatprep.mubr.f32.mxu0 0.0
        %605 = vmatmul.mubr.f32.gmra.mrb[0].mxu0 %v429
        %v606 = vpop.f32.mrb[0].mxu0
        %v607 = vadd.f32 %v401, %v606
        %v608 = vpop.f32.mrb[0].mxu0
        %609 = vmatprep.mubr.f32.mxu0 0.0
        %610 = vmatmul.mubr.f32.gmra.mrb[0].mxu0 %v432
        %v611 = vpop.f32.mrb[0].mxu0
        %v612 = vadd.f32 %v401, %v611
        %v613 = vpop.f32.mrb[0].mxu0
        %614 = vmatprep.mubr.f32.mxu0 0.0
        %615 = vmatmul.mubr.f32.gmra.mrb[0].mxu0 %v435
        %v616 = vpop.f32.mrb[0].mxu0
        %v617 = vadd.f32 %v401, %v616
        %v618 = vpop.f32.mrb[0].mxu0
        %619 = vmatprep.mubr.f32.mxu0 0.0
        %620 = vmatmul.mubr.f32.gmra.mrb[0].mxu0 %v438
        %v621 = vpop.f32.mrb[0].mxu0
        %v622 = vadd.f32 %v401, %v621
        %v623 = vpop.f32.mrb[0].mxu0
        %624 = vmatprep.mubr.f32.mxu0 0.0
        %625 = vmatmul.mubr.f32.gmra.mrb[0].mxu0 %v441
        %v626 = vpop.f32.mrb[0].mxu0
        %v627 = vadd.f32 %v401, %v626
        %v628 = vpop.f32.mrb[0].mxu0
        %629 = vmatprep.mubr.f32.mxu0 0.0
        %630 = vmatmul.mubr.f32.gmra.mrb[0].mxu0 %v444
        %v631 = vpop.f32.mrb[0].mxu0
        %v632 = vadd.f32 %v401, %v631
        %v633 = vpop.f32.mrb[0].mxu0
        %634 = vmatprep.mubr.f32.mxu0 0.0
        %635 = vmatmul.mubr.f32.gmra.mrb[0].mxu0 %v447
        %v636 = vpop.f32.mrb[0].mxu0
        %v637 = vadd.f32 %v401, %v636
        %v638 = vpop.f32.mrb[0].mxu0
        %639 = vmatprep.mubr.f32.mxu0 0.0
        %640 = vmatmul.mubr.f32.gmra.mrb[0].mxu0 %v450
        %v641 = vpop.f32.mrb[0].mxu0
        %v642 = vadd.f32 %v401, %v641
        %v643 = vpop.f32.mrb[0].mxu0
        %644 = vmatprep.mubr.f32.mxu0 0.0
        %645 = vmatmul.mubr.f32.gmra.mrb[0].mxu0 %v453
        %v646 = vpop.f32.mrb[0].mxu0
        %v647 = vadd.f32 %v401, %v646
        %v648 = vpop.f32.mrb[0].mxu0
        %649 = vmatprep.mubr.f32.mxu0 0.0
        %650 = vmatmul.mubr.f32.gmra.mrb[0].mxu0 %v456
        %v651 = vpop.f32.mrb[0].mxu0
        %v652 = vadd.f32 %v401, %v651
        %v653 = vpop.f32.mrb[0].mxu0
        %654 = vmatprep.mubr.f32.mxu0 0.0
        %655 = vmatmul.mubr.f32.gmra.mrb[0].mxu0 %v459
        %v656 = vpop.f32.mrb[0].mxu0
        %v657 = vadd.f32 %v401, %v656
        %v658 = vpop.f32.mrb[0].mxu0
        %659 = vmatprep.mubr.f32.mxu0 0.0
        %660 = vmatmul.mubr.f32.gmra.mrb[0].mxu0 %v462
        %v661 = vpop.f32.mrb[0].mxu0
        %v662 = vadd.f32 %v401, %v661
        %v663 = vpop.f32.mrb[0].mxu0
        %664 = vmatprep.mubr.f32.mxu0 0.0
        %665 = vmatmul.mubr.f32.gmra.mrb[0].mxu0 %v465
        %v666 = vpop.f32.mrb[0].mxu0
        %v667 = vadd.f32 %v401, %v666
        %v668 = vpop.f32.mrb[0].mxu0
        %669 = vmatprep.mubr.f32.mxu0 0.0
        %670 = vmatmul.mubr.f32.gmra.mrb[0].mxu0 %v468
        %v671 = vpop.f32.mrb[0].mxu0
        %v672 = vadd.f32 %v401, %v671
        %v673 = vpop.f32.mrb[0].mxu0
        %674 = vmatprep.mubr.f32.mxu0 0.0
        %675 = vmatmul.mubr.f32.gmra.mrb[0].mxu0 %v471
        %v676 = vpop.f32.mrb[0].mxu0
        %v677 = vadd.f32 %v401, %v676
        %v678 = vpop.f32.mrb[0].mxu0
        %679 = vmatprep.mubr.f32.mxu0 0.0
        %680 = vmatmul.mubr.f32.gmra.mrb[0].mxu0 %v474
        %v681 = vpop.f32.mrb[0].mxu0
        %v682 = vadd.f32 %v401, %v681
        %v683 = vpop.f32.mrb[0].mxu0
        %684 = vmatprep.mubr.f32.mxu0 0.0
        %685 = vmatmul.mubr.f32.gmra.mrb[0].mxu0 %v477
        %v686 = vpop.f32.mrb[0].mxu0
        %v687 = vadd.f32 %v401, %v686
        %v688 = vpop.f32.mrb[0].mxu0
        %689 = vmatprep.mubr.f32.mxu0 0.0
        %690 = vmatmul.mubr.f32.gmra.mrb[0].mxu0 %v480
        %v691 = vpop.f32.mrb[0].mxu0
        %v692 = vadd.f32 %v401, %v691
        %v693 = vpop.f32.mrb[0].mxu0
        %694 = vmatprep.mubr.f32.mxu0 0.0
        %695 = vmatmul.mubr.f32.gmra.mrb[0].mxu0 %v483
        %v696 = vpop.f32.mrb[0].mxu0
        %v697 = vadd.f32 %v401, %v696
        %v698 = vpop.f32.mrb[0].mxu0
        %699 = vmatprep.mubr.f32.mxu0 0.0
        %700 = vmatmul.mubr.f32.gmra.mrb[0].mxu0 %v486
        %v701 = vpop.f32.mrb[0].mxu0
        %v702 = vadd.f32 %v401, %v701
        %v703 = vpop.f32.mrb[0].mxu0
        %704 = vmatprep.mubr.f32.mxu0 0.0
        %705 = vmatmul.mubr.f32.gmra.mrb[0].mxu0 %v489
        %v706 = vpop.f32.mrb[0].mxu0
        %v707 = vadd.f32 %v401, %v706
        %v708 = vpop.f32.mrb[0].mxu0
        %709 = vmatprep.mubr.f32.mxu0 0.0
        %710 = vmatmul.mubr.f32.gmra.mrb[0].mxu0 %v492
        %v711 = vpop.f32.mrb[0].mxu0
        %v712 = vadd.f32 %v401, %v711
        %v713 = vpop.f32.mrb[0].mxu0
        %714 = vmatprep.mubr.f32.mxu0 0.0
        %715 = vmatmul.mubr.f32.gmra.mrb[0].mxu0 %v495
        %v716 = vpop.f32.mrb[0].mxu0
        %v717 = vadd.f32 %v401, %v716
        %v718 = vpop.f32.mrb[0].mxu0
        %719 = vmatprep.mubr.f32.mxu0 0.0
        %720 = vmatmul.mubr.f32.gmra.mrb[0].mxu0 %v498
        %v721 = vpop.f32.mrb[0].mxu0
        %v722 = vadd.f32 %v401, %v721
        %v723 = vpop.f32.mrb[0].mxu0
        %724 = vdwg.mxu0
        %v725 = vmax.f32 %v567, 0.0
        %v726 = vmax.f32 %v572, 0.0
        %v727 = vmax.f32 %v577, 0.0
        %v728 = vmax.f32 %v582, 0.0
        %v729 = vmax.f32 %v587, 0.0
        %v730 = vmax.f32 %v592, 0.0
        %v731 = vmax.f32 %v597, 0.0
        %v732 = vmax.f32 %v602, 0.0
        %v733 = vmax.f32 %v607, 0.0
        %v734 = vmax.f32 %v612, 0.0
        %v735 = vmax.f32 %v617, 0.0
        %v736 = vmax.f32 %v622, 0.0
        %v737 = vmax.f32 %v627, 0.0
        %v738 = vmax.f32 %v632, 0.0
        %v739 = vmax.f32 %v637, 0.0
        %v740 = vmax.f32 %v642, 0.0
        %v741 = vmax.f32 %v647, 0.0
        %v742 = vmax.f32 %v652, 0.0
        %v743 = vmax.f32 %v657, 0.0
        %v744 = vmax.f32 %v662, 0.0
        %v745 = vmax.f32 %v667, 0.0
        %v746 = vmax.f32 %v672, 0.0
        %v747 = vmax.f32 %v677, 0.0
        %v748 = vmax.f32 %v682, 0.0
        %v749 = vmax.f32 %v687, 0.0
        %v750 = vmax.f32 %v692, 0.0
        %v751 = vmax.f32 %v697, 0.0
        %v752 = vmax.f32 %v702, 0.0
        %v753 = vmax.f32 %v707, 0.0
        %v754 = vmax.f32 %v712, 0.0
        %v755 = vmax.f32 %v717, 0.0
        %v756 = vmax.f32 %v722, 0.0
        %v757 = vld [vmem:[%s1] sm:$0xff]
        %v758 = vld [vmem:[%s1 + $0x8] sm:$0xff]
        %v759 = vld [vmem:[%s1 + $0x10] sm:$0xff]
        %v760 = vld [vmem:[%s1 + $0x18] sm:$0xff]
        %761 = vmatprep.subr.mxu0 0.0
        %762 = vmatpush1.msra.mxu0 %v725
        %763 = vmatprep.subr.mxu0 0.0
        %764 = vmatpush1.msra.mxu0 %v726
        %765 = vmatprep.subr.mxu0 0.0
        %766 = vmatpush1.msra.mxu0 %v727
        %767 = vmatprep.subr.mxu0 0.0
        %768 = vmatpush1.msra.mxu0 %v728
        %769 = vmatprep.subr.mxu0 0.0
        %770 = vmatpush1.msra.mxu0 %v729
        %771 = vmatprep.subr.mxu0 0.0
        %772 = vmatpush1.msra.mxu0 %v730
        %773 = vmatprep.subr.mxu0 0.0
        %774 = vmatpush1.msra.mxu0 %v731
        %775 = vmatprep.subr.mxu0 0.0
        %776 = vmatpush1.msra.mxu0 %v732
        %777 = vmatprep.subr.mxu0 0.0
        %778 = vmatpush1.msra.mxu0 %v733
        %779 = vmatprep.subr.mxu0 0.0
        %780 = vmatpush1.msra.mxu0 %v734
        %781 = vmatprep.subr.mxu0 0.0
        %782 = vmatpush1.msra.mxu0 %v735
        %783 = vmatprep.subr.mxu0 0.0
        %784 = vmatpush1.msra.mxu0 %v736
        %785 = vmatprep.subr.mxu0 0.0
        %786 = vmatpush1.msra.mxu0 %v737
        %787 = vmatprep.subr.mxu0 0.0
        %788 = vmatpush1.msra.mxu0 %v738
        %789 = vmatprep.subr.mxu0 0.0
        %790 = vmatpush1.msra.mxu0 %v739
        %791 = vmatprep.subr.mxu0 0.0
        %792 = vmatpush1.msra.mxu0 %v740
        %793 = vmatprep.subr.mxu0 0.0
        %794 = vmatpush1.msra.mxu0 %v741
        %795 = vmatprep.subr.mxu0 0.0
        %796 = vmatpush1.msra.mxu0 %v742
        %797 = vmatprep.subr.mxu0 0.0
        %798 = vmatpush1.msra.mxu0 %v743
        %799 = vmatprep.subr.mxu0 0.0
        %800 = vmatpush1.msra.mxu0 %v744
        %801 = vmatprep.subr.mxu0 0.0
        %802 = vmatpush1.msra.mxu0 %v745
        %803 = vmatprep.subr.mxu0 0.0
        %804 = vmatpush1.msra.mxu0 %v746
        %805 = vmatprep.subr.mxu0 0.0
        %806 = vmatpush1.msra.mxu0 %v747
        %807 = vmatprep.subr.mxu0 0.0
        %808 = vmatpush1.msra.mxu0 %v748
        %809 = vmatprep.subr.mxu0 0.0
        %810 = vmatpush1.msra.mxu0 %v749
        %811 = vmatprep.subr.mxu0 0.0
        %812 = vmatpush1.msra.mxu0 %v750
        %813 = vmatprep.subr.mxu0 0.0
        %814 = vmatpush1.msra.mxu0 %v751
        %815 = vmatprep.subr.mxu0 0.0
        %816 = vmatpush1.msra.mxu0 %v752
        %817 = vmatprep.subr.mxu0 0.0
        %818 = vmatpush1.msra.mxu0 %v753
        %819 = vmatprep.subr.mxu0 0.0
        %820 = vmatpush1.msra.mxu0 %v754
        %821 = vmatprep.subr.mxu0 0.0
        %822 = vmatpush1.msra.mxu0 %v755
        %823 = vmatprep.subr.mxu0 0.0
        %824 = vmatpush1.msra.mxu0 %v756
        %825 = vmatprep.mubr.f32.mxu0 %v758
        %826 = vmatmul.mubr.f32.gmra.mrb[0].mxu0 %v757
        %v827 = vpop.f32.mrb[0].mxu0
        %v828 = vadd.f32 0.0, %v827
        %v829 = vpop.f32.mrb[0].mxu0
        %830 = vmatprep.mubr.f32.mxu0 %v760
        %831 = vmatmul.mubr.f32.gmra.mrb[0].mxu0 %v759
        %v832 = vpop.f32.mrb[0].mxu0
        %v833 = vadd.f32 0.0, %v832
        %v834 = vpop.f32.mrb[0].mxu0
        %835 = vdwg.mxu0
        %vm836 = vcmask 261120
        %837 = vst.msk [vmem:[#allocation2] sm:$0xff] %vm836, %v828
        %838 = vst.msk [vmem:[#allocation2 + $0x8] sm:$0xff] %vm836, %v833
        %v839 = vld [vmem:[#allocation2] sm:$0xff]
        %v840 = vld [vmem:[#allocation2 + $0x8] sm:$0x3f]
        %v841 = vld [vmem:[%s4] sm:$0xff]
        %v842 = vld [vmem:[%s4 + $0x8] sm:$0xff]
        %v843 = vld [vmem:[%s4 + $0x10] sm:$0xff]
        %v844 = vld [vmem:[%s4 + $0x18] sm:$0xff]
        %v845 = vld [vmem:[#allocation2 + $0x1] sm:$0xff]
        %v846 = vld [vmem:[#allocation2 + $0x9] sm:$0x3f]
        %s847 = scalar_lea.vmem %s4, 32
        %v848 = vld [vmem:[%s847] sm:$0xff]
        %v849 = vld [vmem:[%s847 + $0x8] sm:$0xff]
        %v850 = vld [vmem:[%s847 + $0x10] sm:$0xff]
        %v851 = vld [vmem:[%s847 + $0x18] sm:$0xff]
        %v853 = vsel %vm836, %v845, 0
        %v856 = vsel %vm836, %v846, 0
        %858 = vmatprep.subr.mxu0 0.0
        %859 = vmatpush1.msra.mxu0 %v848
        %860 = vmatprep.subr.mxu0 0.0
        %861 = vmatpush1.msra.mxu0 %v849
        %862 = vmatprep.subr.mxu0 0.0
        %863 = vmatpush1.msra.mxu0 %v850
        %864 = vmatprep.subr.mxu0 0.0
        %865 = vmatpush1.msra.mxu0 %v851
        %866 = vmatprep.subr.mxu0 0.0
        %867 = vmatpush1.msra.mxu0 0.0
        %868 = vmatprep.subr.mxu0 0.0
        %869 = vmatpush1.msra.mxu0 0.0
        %870 = vmatprep.subr.mxu0 0.0
        %871 = vmatpush1.msra.mxu0 0.0
        %872 = vmatprep.subr.mxu0 0.0
        %873 = vmatpush1.msra.mxu0 0.0
        %874 = vmatprep.subr.mxu0 0.0
        %875 = vmatpush1.msra.mxu0 0.0
        %876 = vmatprep.subr.mxu0 0.0
        %877 = vmatpush1.msra.mxu0 0.0
        %878 = vmatprep.subr.mxu0 0.0
        %879 = vmatpush1.msra.mxu0 0.0
        %880 = vmatprep.subr.mxu0 0.0
        %881 = vmatpush1.msra.mxu0 0.0
        %882 = vmatprep.subr.mxu0 0.0
        %883 = vmatpush1.msra.mxu0 0.0
        %884 = vmatprep.subr.mxu0 0.0
        %885 = vmatpush1.msra.mxu0 0.0
        %886 = vmatprep.subr.mxu0 0.0
        %887 = vmatpush1.msra.mxu0 0.0
        %888 = vmatprep.subr.mxu0 0.0
        %889 = vmatpush1.msra.mxu0 0.0
        %890 = vmatprep.subr.mxu0 0.0
        %891 = vmatpush1.msra.mxu0 0.0
        %892 = vmatprep.subr.mxu0 0.0
        %893 = vmatpush1.msra.mxu0 0.0
        %894 = vmatprep.subr.mxu0 0.0
        %895 = vmatpush1.msra.mxu0 0.0
        %896 = vmatprep.subr.mxu0 0.0
        %897 = vmatpush1.msra.mxu0 0.0
        %898 = vmatprep.subr.mxu0 0.0
        %899 = vmatpush1.msra.mxu0 0.0
        %900 = vmatprep.subr.mxu0 0.0
        %901 = vmatpush1.msra.mxu0 0.0
        %902 = vmatprep.subr.mxu0 0.0
        %903 = vmatpush1.msra.mxu0 0.0
        %904 = vmatprep.subr.mxu0 0.0
        %905 = vmatpush1.msra.mxu0 0.0
        %906 = vmatprep.subr.mxu0 0.0
        %907 = vmatpush1.msra.mxu0 0.0
        %908 = vmatprep.subr.mxu0 0.0
        %909 = vmatpush1.msra.mxu0 0.0
        %910 = vmatprep.subr.mxu0 0.0
        %911 = vmatpush1.msra.mxu0 0.0
        %912 = vmatprep.subr.mxu0 0.0
        %913 = vmatpush1.msra.mxu0 0.0
        %914 = vmatprep.subr.mxu0 0.0
        %915 = vmatpush1.msra.mxu0 0.0
        %916 = vmatprep.subr.mxu0 0.0
        %917 = vmatpush1.msra.mxu0 0.0
        %918 = vmatprep.subr.mxu0 0.0
        %919 = vmatpush1.msra.mxu0 0.0
        %920 = vmatprep.subr.mxu0 0.0
        %921 = vmatpush1.msra.mxu0 0.0
        %922 = vmatprep.mubr.f32.mxu0 0.0
        %923 = vmatmul.mubr.f32.gmra.mrb[0].mxu0 %v853
        %v924 = vpop.f32.mrb[0].mxu0
        %v925 = vadd.f32 0.0, %v924
        %v926 = vpop.f32.mrb[0].mxu0
        %927 = vmatprep.mubr.f32.mxu0 0.0
        %928 = vmatmul.mubr.f32.gmra.mrb[0].mxu0 %v856
        %v929 = vpop.f32.mrb[0].mxu0
        %v930 = vadd.f32 0.0, %v929
        %v931 = vpop.f32.mrb[0].mxu0
        %932 = vdwg.mxu0
        %v934 = vsel %vm836, %v839, 0
        %v937 = vsel %vm836, %v840, 0
        %939 = vmatprep.subr.mxu0 0.0
        %940 = vmatpush1.msra.mxu0 %v841
        %941 = vmatprep.subr.mxu0 0.0
        %942 = vmatpush1.msra.mxu0 %v842
        %943 = vmatprep.subr.mxu0 0.0
        %944 = vmatpush1.msra.mxu0 %v843
        %945 = vmatprep.subr.mxu0 0.0
        %946 = vmatpush1.msra.mxu0 %v844
        %947 = vmatprep.subr.mxu0 0.0
        %948 = vmatpush1.msra.mxu0 0.0
        %949 = vmatprep.subr.mxu0 0.0
        %950 = vmatpush1.msra.mxu0 0.0
        %951 = vmatprep.subr.mxu0 0.0
        %952 = vmatpush1.msra.mxu0 0.0
        %953 = vmatprep.subr.mxu0 0.0
        %954 = vmatpush1.msra.mxu0 0.0
        %955 = vmatprep.subr.mxu0 0.0
        %956 = vmatpush1.msra.mxu0 0.0
        %957 = vmatprep.subr.mxu0 0.0
        %958 = vmatpush1.msra.mxu0 0.0
        %959 = vmatprep.subr.mxu0 0.0
        %960 = vmatpush1.msra.mxu0 0.0
        %961 = vmatprep.subr.mxu0 0.0
        %962 = vmatpush1.msra.mxu0 0.0
        %963 = vmatprep.subr.mxu0 0.0
        %964 = vmatpush1.msra.mxu0 0.0
        %965 = vmatprep.subr.mxu0 0.0
        %966 = vmatpush1.msra.mxu0 0.0
        %967 = vmatprep.subr.mxu0 0.0
        %968 = vmatpush1.msra.mxu0 0.0
        %969 = vmatprep.subr.mxu0 0.0
        %970 = vmatpush1.msra.mxu0 0.0
        %971 = vmatprep.subr.mxu0 0.0
        %972 = vmatpush1.msra.mxu0 0.0
        %973 = vmatprep.subr.mxu0 0.0
        %974 = vmatpush1.msra.mxu0 0.0
        %975 = vmatprep.subr.mxu0 0.0
        %976 = vmatpush1.msra.mxu0 0.0
        %977 = vmatprep.subr.mxu0 0.0
        %978 = vmatpush1.msra.mxu0 0.0
        %979 = vmatprep.subr.mxu0 0.0
        %980 = vmatpush1.msra.mxu0 0.0
        %981 = vmatprep.subr.mxu0 0.0
        %982 = vmatpush1.msra.mxu0 0.0
        %983 = vmatprep.subr.mxu0 0.0
        %984 = vmatpush1.msra.mxu0 0.0
        %985 = vmatprep.subr.mxu0 0.0
        %986 = vmatpush1.msra.mxu0 0.0
        %987 = vmatprep.subr.mxu0 0.0
        %988 = vmatpush1.msra.mxu0 0.0
        %989 = vmatprep.subr.mxu0 0.0
        %990 = vmatpush1.msra.mxu0 0.0
        %991 = vmatprep.subr.mxu0 0.0
        %992 = vmatpush1.msra.mxu0 0.0
        %993 = vmatprep.subr.mxu0 0.0
        %994 = vmatpush1.msra.mxu0 0.0
        %995 = vmatprep.subr.mxu0 0.0
        %996 = vmatpush1.msra.mxu0 0.0
        %997 = vmatprep.subr.mxu0 0.0
        %998 = vmatpush1.msra.mxu0 0.0
        %999 = vmatprep.subr.mxu0 0.0
        %1000 = vmatpush1.msra.mxu0 0.0
        %1001 = vmatprep.subr.mxu0 0.0
        %1002 = vmatpush1.msra.mxu0 0.0
        %1003 = vmatprep.mubr.f32.mxu0 0.0
        %1004 = vmatmul.mubr.f32.gmra.mrb[0].mxu0 %v934
        %v1005 = vpop.f32.mrb[0].mxu0
        %v1006 = vadd.f32 %v925, %v1005
        %v1007 = vpop.f32.mrb[0].mxu0
        %1008 = vmatprep.mubr.f32.mxu0 0.0
        %1009 = vmatmul.mubr.f32.gmra.mrb[0].mxu0 %v937
        %v1010 = vpop.f32.mrb[0].mxu0
        %v1011 = vadd.f32 %v930, %v1010
        %v1012 = vpop.f32.mrb[0].mxu0
        %1013 = vdwg.mxu0
        %v1014 = vld [vmem:[#allocation2 + $0x2] sm:$0xff]
        %v1015 = vld [vmem:[#allocation2 + $0xa] sm:$0x3f]
        %s1016 = scalar_lea.vmem %s4, 64
        %v1017 = vld [vmem:[%s1016] sm:$0xff]
        %v1018 = vld [vmem:[%s1016 + $0x8] sm:$0xff]
        %v1019 = vld [vmem:[%s1016 + $0x10] sm:$0xff]
        %v1020 = vld [vmem:[%s1016 + $0x18] sm:$0xff]
        %v1022 = vsel %vm836, %v1014, 0
        %v1025 = vsel %vm836, %v1015, 0
        %1027 = vmatprep.subr.mxu0 0.0
        %1028 = vmatpush1.msra.mxu0 %v1017
        %1029 = vmatprep.subr.mxu0 0.0
        %1030 = vmatpush1.msra.mxu0 %v1018
        %1031 = vmatprep.subr.mxu0 0.0
        %1032 = vmatpush1.msra.mxu0 %v1019
        %1033 = vmatprep.subr.mxu0 0.0
        %1034 = vmatpush1.msra.mxu0 %v1020
        %1035 = vmatprep.subr.mxu0 0.0
        %1036 = vmatpush1.msra.mxu0 0.0
        %1037 = vmatprep.subr.mxu0 0.0
        %1038 = vmatpush1.msra.mxu0 0.0
        %1039 = vmatprep.subr.mxu0 0.0
        %1040 = vmatpush1.msra.mxu0 0.0
        %1041 = vmatprep.subr.mxu0 0.0
        %1042 = vmatpush1.msra.mxu0 0.0
        %1043 = vmatprep.subr.mxu0 0.0
        %1044 = vmatpush1.msra.mxu0 0.0
        %1045 = vmatprep.subr.mxu0 0.0
        %1046 = vmatpush1.msra.mxu0 0.0
        %1047 = vmatprep.subr.mxu0 0.0
        %1048 = vmatpush1.msra.mxu0 0.0
        %1049 = vmatprep.subr.mxu0 0.0
        %1050 = vmatpush1.msra.mxu0 0.0
        %1051 = vmatprep.subr.mxu0 0.0
        %1052 = vmatpush1.msra.mxu0 0.0
        %1053 = vmatprep.subr.mxu0 0.0
        %1054 = vmatpush1.msra.mxu0 0.0
        %1055 = vmatprep.subr.mxu0 0.0
        %1056 = vmatpush1.msra.mxu0 0.0
        %1057 = vmatprep.subr.mxu0 0.0
        %1058 = vmatpush1.msra.mxu0 0.0
        %1059 = vmatprep.subr.mxu0 0.0
        %1060 = vmatpush1.msra.mxu0 0.0
        %1061 = vmatprep.subr.mxu0 0.0
        %1062 = vmatpush1.msra.mxu0 0.0
        %1063 = vmatprep.subr.mxu0 0.0
        %1064 = vmatpush1.msra.mxu0 0.0
        %1065 = vmatprep.subr.mxu0 0.0
        %1066 = vmatpush1.msra.mxu0 0.0
        %1067 = vmatprep.subr.mxu0 0.0
        %1068 = vmatpush1.msra.mxu0 0.0
        %1069 = vmatprep.subr.mxu0 0.0
        %1070 = vmatpush1.msra.mxu0 0.0
        %1071 = vmatprep.subr.mxu0 0.0
        %1072 = vmatpush1.msra.mxu0 0.0
        %1073 = vmatprep.subr.mxu0 0.0
        %1074 = vmatpush1.msra.mxu0 0.0
        %1075 = vmatprep.subr.mxu0 0.0
        %1076 = vmatpush1.msra.mxu0 0.0
        %1077 = vmatprep.subr.mxu0 0.0
        %1078 = vmatpush1.msra.mxu0 0.0
        %1079 = vmatprep.subr.mxu0 0.0
        %1080 = vmatpush1.msra.mxu0 0.0
        %1081 = vmatprep.subr.mxu0 0.0
        %1082 = vmatpush1.msra.mxu0 0.0
        %1083 = vmatprep.subr.mxu0 0.0
        %1084 = vmatpush1.msra.mxu0 0.0
        %1085 = vmatprep.subr.mxu0 0.0
        %1086 = vmatpush1.msra.mxu0 0.0
        %1087 = vmatprep.subr.mxu0 0.0
        %1088 = vmatpush1.msra.mxu0 0.0
        %1089 = vmatprep.subr.mxu0 0.0
        %1090 = vmatpush1.msra.mxu0 0.0
        %1091 = vmatprep.mubr.f32.mxu0 0.0
        %1092 = vmatmul.mubr.f32.gmra.mrb[0].mxu0 %v1022
        %v1093 = vpop.f32.mrb[0].mxu0
        %v1094 = vadd.f32 0.0, %v1093
        %v1095 = vpop.f32.mrb[0].mxu0
        %1096 = vmatprep.mubr.f32.mxu0 0.0
        %1097 = vmatmul.mubr.f32.gmra.mrb[0].mxu0 %v1025
        %v1098 = vpop.f32.mrb[0].mxu0
        %v1099 = vadd.f32 0.0, %v1098
        %v1100 = vpop.f32.mrb[0].mxu0
        %1101 = vdwg.mxu0
        %v1102 = vadd.f32 %v1006, %v1094
        %v1103 = vadd.f32 %v1011, %v1099
        %v1104 = vld [vmem:[%s5] sm:$0x1]
        %v1106 = vlaneseq
        %v1107 = vshrl.u32 %v1106, 7
        %v1108 = vsub.s32 0, %v1107
        %v1109 = vrot.slane %v1104, %v1108
        %v1111 = vmul.f32 %v1102, %v1109
        %v1112 = vmul.f32 %v1103, %v1109
        %v1113 = vld [vmem:[%s6] sm:$0x1]
        %v1115 = vlaneseq
        %v1116 = vshrl.u32 %v1115, 7
        %v1117 = vsub.s32 0, %v1116
        %v1118 = vrot.slane %v1113, %v1117
        %v1120 = vadd.f32 %v1111, %v1118
        %v1121 = vadd.f32 %v1112, %v1118
        %v1122 = vmax.f32 %v1120, 0.0
        %v1123 = vmax.f32 %v1121, 0.0
        %1124 = vst.msk [vmem:[#allocation3] sm:$0xff] %vm836, %v1122
        %vm1125 = vcmask 259072
        %1126 = vst.msk [vmem:[#allocation3 + $0x8] sm:$0x3f] %vm1125, %v1123
        %v1127 = vld [vmem:[#allocation3] ss:$2 sm:$0x7f]
        %s1128 = scalar_lea.vmem [#allocation3], 1
        %v1129 = vld [vmem:[%s1128] ss:$2 sm:$0x7f]
        %v1130 = vmax.f32 %v1127, %v1129
        %vm1131 = vcmask 260096
        %1132 = vst.msk [vmem:[#allocation4] sm:$0x7f] %vm1131, %v1130
        %v1133 = vld [vmem:[#allocation4] sm:$0x1f]
        %v1134 = vld [vmem:[%s7] sm:$0xff]
        %v1135 = vld [vmem:[%s7 + $0x8] sm:$0xff]
        %v1136 = vld [vmem:[%s7 + $0x10] sm:$0xff]
        %v1137 = vld [vmem:[%s7 + $0x18] sm:$0xff]
        %v1138 = vld [vmem:[#allocation4 + $0x1] sm:$0x1f]
        %s1139 = scalar_lea.vmem %s7, 32
        %v1140 = vld [vmem:[%s1139] sm:$0xff]
        %v1141 = vld [vmem:[%s1139 + $0x8] sm:$0xff]
        %v1142 = vld [vmem:[%s1139 + $0x10] sm:$0xff]
        %v1143 = vld [vmem:[%s1139 + $0x18] sm:$0xff]
        %v1145 = vsel %vm836, %v1138, 0
        %1147 = vmatprep.subr.mxu0 0.0
        %1148 = vmatpush1.msra.mxu0 %v1140
        %1149 = vmatprep.subr.mxu0 0.0
        %1150 = vmatpush1.msra.mxu0 %v1141
        %1151 = vmatprep.subr.mxu0 0.0
        %1152 = vmatpush1.msra.mxu0 %v1142
        %1153 = vmatprep.subr.mxu0 0.0
        %1154 = vmatpush1.msra.mxu0 %v1143
        %1155 = vmatprep.subr.mxu0 0.0
        %1156 = vmatpush1.msra.mxu0 0.0
        %1157 = vmatprep.subr.mxu0 0.0
        %1158 = vmatpush1.msra.mxu0 0.0
        %1159 = vmatprep.subr.mxu0 0.0
        %1160 = vmatpush1.msra.mxu0 0.0
        %1161 = vmatprep.subr.mxu0 0.0
        %1162 = vmatpush1.msra.mxu0 0.0
        %1163 = vmatprep.subr.mxu0 0.0
        %1164 = vmatpush1.msra.mxu0 0.0
        %1165 = vmatprep.subr.mxu0 0.0
        %1166 = vmatpush1.msra.mxu0 0.0
        %1167 = vmatprep.subr.mxu0 0.0
        %1168 = vmatpush1.msra.mxu0 0.0
        %1169 = vmatprep.subr.mxu0 0.0
        %1170 = vmatpush1.msra.mxu0 0.0
        %1171 = vmatprep.subr.mxu0 0.0
        %1172 = vmatpush1.msra.mxu0 0.0
        %1173 = vmatprep.subr.mxu0 0.0
        %1174 = vmatpush1.msra.mxu0 0.0
        %1175 = vmatprep.subr.mxu0 0.0
        %1176 = vmatpush1.msra.mxu0 0.0
        %1177 = vmatprep.subr.mxu0 0.0
        %1178 = vmatpush1.msra.mxu0 0.0
        %1179 = vmatprep.subr.mxu0 0.0
        %1180 = vmatpush1.msra.mxu0 0.0
        %1181 = vmatprep.subr.mxu0 0.0
        %1182 = vmatpush1.msra.mxu0 0.0
        %1183 = vmatprep.subr.mxu0 0.0
        %1184 = vmatpush1.msra.mxu0 0.0
        %1185 = vmatprep.subr.mxu0 0.0
        %1186 = vmatpush1.msra.mxu0 0.0
        %1187 = vmatprep.subr.mxu0 0.0
        %1188 = vmatpush1.msra.mxu0 0.0
        %1189 = vmatprep.subr.mxu0 0.0
        %1190 = vmatpush1.msra.mxu0 0.0
        %1191 = vmatprep.subr.mxu0 0.0
        %1192 = vmatpush1.msra.mxu0 0.0
        %1193 = vmatprep.subr.mxu0 0.0
        %1194 = vmatpush1.msra.mxu0 0.0
        %1195 = vmatprep.subr.mxu0 0.0
        %1196 = vmatpush1.msra.mxu0 0.0
        %1197 = vmatprep.subr.mxu0 0.0
        %1198 = vmatpush1.msra.mxu0 0.0
        %1199 = vmatprep.subr.mxu0 0.0
        %1200 = vmatpush1.msra.mxu0 0.0
        %1201 = vmatprep.subr.mxu0 0.0
        %1202 = vmatpush1.msra.mxu0 0.0
        %1203 = vmatprep.subr.mxu0 0.0
        %1204 = vmatpush1.msra.mxu0 0.0
        %1205 = vmatprep.subr.mxu0 0.0
        %1206 = vmatpush1.msra.mxu0 0.0
        %1207 = vmatprep.subr.mxu0 0.0
        %1208 = vmatpush1.msra.mxu0 0.0
        %1209 = vmatprep.subr.mxu0 0.0
        %1210 = vmatpush1.msra.mxu0 0.0
        %1211 = vmatprep.mubr.f32.mxu0 0.0
        %1212 = vmatmul.mubr.f32.gmra.mrb[0].mxu0 %v1145
        %v1213 = vpop.f32.mrb[0].mxu0
        %v1214 = vadd.f32 0.0, %v1213
        %v1215 = vpop.f32.mrb[0].mxu0
        %1216 = vdwg.mxu0
        %v1218 = vsel %vm836, %v1133, 0
        %1220 = vmatprep.subr.mxu0 0.0
        %1221 = vmatpush1.msra.mxu0 %v1134
        %1222 = vmatprep.subr.mxu0 0.0
        %1223 = vmatpush1.msra.mxu0 %v1135
        %1224 = vmatprep.subr.mxu0 0.0
        %1225 = vmatpush1.msra.mxu0 %v1136
        %1226 = vmatprep.subr.mxu0 0.0
        %1227 = vmatpush1.msra.mxu0 %v1137
        %1228 = vmatprep.subr.mxu0 0.0
        %1229 = vmatpush1.msra.mxu0 0.0
        %1230 = vmatprep.subr.mxu0 0.0
        %1231 = vmatpush1.msra.mxu0 0.0
        %1232 = vmatprep.subr.mxu0 0.0
        %1233 = vmatpush1.msra.mxu0 0.0
        %1234 = vmatprep.subr.mxu0 0.0
        %1235 = vmatpush1.msra.mxu0 0.0
        %1236 = vmatprep.subr.mxu0 0.0
        %1237 = vmatpush1.msra.mxu0 0.0
        %1238 = vmatprep.subr.mxu0 0.0
        %1239 = vmatpush1.msra.mxu0 0.0
        %1240 = vmatprep.subr.mxu0 0.0
        %1241 = vmatpush1.msra.mxu0 0.0
        %1242 = vmatprep.subr.mxu0 0.0
        %1243 = vmatpush1.msra.mxu0 0.0
        %1244 = vmatprep.subr.mxu0 0.0
        %1245 = vmatpush1.msra.mxu0 0.0
        %1246 = vmatprep.subr.mxu0 0.0
        %1247 = vmatpush1.msra.mxu0 0.0
        %1248 = vmatprep.subr.mxu0 0.0
        %1249 = vmatpush1.msra.mxu0 0.0
        %1250 = vmatprep.subr.mxu0 0.0
        %1251 = vmatpush1.msra.mxu0 0.0
        %1252 = vmatprep.subr.mxu0 0.0
        %1253 = vmatpush1.msra.mxu0 0.0
        %1254 = vmatprep.subr.mxu0 0.0
        %1255 = vmatpush1.msra.mxu0 0.0
        %1256 = vmatprep.subr.mxu0 0.0
        %1257 = vmatpush1.msra.mxu0 0.0
        %1258 = vmatprep.subr.mxu0 0.0
        %1259 = vmatpush1.msra.mxu0 0.0
        %1260 = vmatprep.subr.mxu0 0.0
        %1261 = vmatpush1.msra.mxu0 0.0
        %1262 = vmatprep.subr.mxu0 0.0
        %1263 = vmatpush1.msra.mxu0 0.0
        %1264 = vmatprep.subr.mxu0 0.0
        %1265 = vmatpush1.msra.mxu0 0.0
        %1266 = vmatprep.subr.mxu0 0.0
        %1267 = vmatpush1.msra.mxu0 0.0
        %1268 = vmatprep.subr.mxu0 0.0
        %1269 = vmatpush1.msra.mxu0 0.0
        %1270 = vmatprep.subr.mxu0 0.0
        %1271 = vmatpush1.msra.mxu0 0.0
        %1272 = vmatprep.subr.mxu0 0.0
        %1273 = vmatpush1.msra.mxu0 0.0
        %1274 = vmatprep.subr.mxu0 0.0
        %1275 = vmatpush1.msra.mxu0 0.0
        %1276 = vmatprep.subr.mxu0 0.0
        %1277 = vmatpush1.msra.mxu0 0.0
        %1278 = vmatprep.subr.mxu0 0.0
        %1279 = vmatpush1.msra.mxu0 0.0
        %1280 = vmatprep.subr.mxu0 0.0
        %1281 = vmatpush1.msra.mxu0 0.0
        %1282 = vmatprep.subr.mxu0 0.0
        %1283 = vmatpush1.msra.mxu0 0.0
        %1284 = vmatprep.mubr.f32.mxu0 0.0
        %1285 = vmatmul.mubr.f32.gmra.mrb[0].mxu0 %v1218
        %v1286 = vpop.f32.mrb[0].mxu0
        %v1287 = vadd.f32 %v1214, %v1286
        %v1288 = vpop.f32.mrb[0].mxu0
        %1289 = vdwg.mxu0
        %v1290 = vld [vmem:[#allocation4 + $0x2] sm:$0x1f]
        %s1291 = scalar_lea.vmem %s7, 64
        %v1292 = vld [vmem:[%s1291] sm:$0xff]
        %v1293 = vld [vmem:[%s1291 + $0x8] sm:$0xff]
        %v1294 = vld [vmem:[%s1291 + $0x10] sm:$0xff]
        %v1295 = vld [vmem:[%s1291 + $0x18] sm:$0xff]
        %v1297 = vsel %vm836, %v1290, 0
        %1299 = vmatprep.subr.mxu0 0.0
        %1300 = vmatpush1.msra.mxu0 %v1292
        %1301 = vmatprep.subr.mxu0 0.0
        %1302 = vmatpush1.msra.mxu0 %v1293
        %1303 = vmatprep.subr.mxu0 0.0
        %1304 = vmatpush1.msra.mxu0 %v1294
        %1305 = vmatprep.subr.mxu0 0.0
        %1306 = vmatpush1.msra.mxu0 %v1295
        %1307 = vmatprep.subr.mxu0 0.0
        %1308 = vmatpush1.msra.mxu0 0.0
        %1309 = vmatprep.subr.mxu0 0.0
        %1310 = vmatpush1.msra.mxu0 0.0
        %1311 = vmatprep.subr.mxu0 0.0
        %1312 = vmatpush1.msra.mxu0 0.0
        %1313 = vmatprep.subr.mxu0 0.0
        %1314 = vmatpush1.msra.mxu0 0.0
        %1315 = vmatprep.subr.mxu0 0.0
        %1316 = vmatpush1.msra.mxu0 0.0
        %1317 = vmatprep.subr.mxu0 0.0
        %1318 = vmatpush1.msra.mxu0 0.0
        %1319 = vmatprep.subr.mxu0 0.0
        %1320 = vmatpush1.msra.mxu0 0.0
        %1321 = vmatprep.subr.mxu0 0.0
        %1322 = vmatpush1.msra.mxu0 0.0
        %1323 = vmatprep.subr.mxu0 0.0
        %1324 = vmatpush1.msra.mxu0 0.0
        %1325 = vmatprep.subr.mxu0 0.0
        %1326 = vmatpush1.msra.mxu0 0.0
        %1327 = vmatprep.subr.mxu0 0.0
        %1328 = vmatpush1.msra.mxu0 0.0
        %1329 = vmatprep.subr.mxu0 0.0
        %1330 = vmatpush1.msra.mxu0 0.0
        %1331 = vmatprep.subr.mxu0 0.0
        %1332 = vmatpush1.msra.mxu0 0.0
        %1333 = vmatprep.subr.mxu0 0.0
        %1334 = vmatpush1.msra.mxu0 0.0
        %1335 = vmatprep.subr.mxu0 0.0
        %1336 = vmatpush1.msra.mxu0 0.0
        %1337 = vmatprep.subr.mxu0 0.0
        %1338 = vmatpush1.msra.mxu0 0.0
        %1339 = vmatprep.subr.mxu0 0.0
        %1340 = vmatpush1.msra.mxu0 0.0
        %1341 = vmatprep.subr.mxu0 0.0
        %1342 = vmatpush1.msra.mxu0 0.0
        %1343 = vmatprep.subr.mxu0 0.0
        %1344 = vmatpush1.msra.mxu0 0.0
        %1345 = vmatprep.subr.mxu0 0.0
        %1346 = vmatpush1.msra.mxu0 0.0
        %1347 = vmatprep.subr.mxu0 0.0
        %1348 = vmatpush1.msra.mxu0 0.0
        %1349 = vmatprep.subr.mxu0 0.0
        %1350 = vmatpush1.msra.mxu0 0.0
        %1351 = vmatprep.subr.mxu0 0.0
        %1352 = vmatpush1.msra.mxu0 0.0
        %1353 = vmatprep.subr.mxu0 0.0
        %1354 = vmatpush1.msra.mxu0 0.0
        %1355 = vmatprep.subr.mxu0 0.0
        %1356 = vmatpush1.msra.mxu0 0.0
        %1357 = vmatprep.subr.mxu0 0.0
        %1358 = vmatpush1.msra.mxu0 0.0
        %1359 = vmatprep.subr.mxu0 0.0
        %1360 = vmatpush1.msra.mxu0 0.0
        %1361 = vmatprep.subr.mxu0 0.0
        %1362 = vmatpush1.msra.mxu0 0.0
        %1363 = vmatprep.mubr.f32.mxu0 0.0
        %1364 = vmatmul.mubr.f32.gmra.mrb[0].mxu0 %v1297
        %v1365 = vpop.f32.mrb[0].mxu0
        %v1366 = vadd.f32 0.0, %v1365
        %v1367 = vpop.f32.mrb[0].mxu0
        %1368 = vdwg.mxu0
        %v1369 = vadd.f32 %v1287, %v1366
        %v1370 = vld [vmem:[%s8] sm:$0x1]
        %v1372 = vlaneseq
        %v1373 = vshrl.u32 %v1372, 7
        %v1374 = vsub.s32 0, %v1373
        %v1375 = vrot.slane %v1370, %v1374
        %v1377 = vmul.f32 %v1369, %v1375
        %v1378 = vld [vmem:[%s9] sm:$0x1]
        %v1380 = vlaneseq
        %v1381 = vshrl.u32 %v1380, 7
        %v1382 = vsub.s32 0, %v1381
        %v1383 = vrot.slane %v1378, %v1382
        %v1385 = vadd.f32 %v1377, %v1383
        %v1386 = vmax.f32 %v1385, 0.0
        %vm1387 = vcmask 258048
        %1388 = vst.msk [vmem:[#allocation5] sm:$0x1f] %vm1387, %v1386
        %v1389 = vld [vmem:[#allocation5] ss:$2 sm:$0x3]
        %s1390 = scalar_lea.vmem [#allocation5], 1
        %v1391 = vld [vmem:[%s1390] ss:$2 sm:$0x3]
        %v1392 = vmax.f32 %v1389, %v1391
        %vm1393 = vcmask 254976
        %1394 = vst.msk [vmem:[%s352] sm:$0x3] %vm1393, %v1392
        %s1395 = sand.u32 %s247, 1
        %s1396 = scalar_lea.sflag [#allocation7], %s1395
        %s1397 = sand.u32 %s247, 1
        %s1398 = smul.addr %s1397, 2
        %s1399 = scalar_lea.vmem [#allocation6], %s1398
        // Predicated region
        $region61: #{tpu_custom_call.1} parent=59 // pred_check
          %p1400 = pneg %p257
        $region62: #{tpu_custom_call.1} parent=59 // pred_check_branch
          %1402 = sbr.rel (%p1400) target = $region64
        $region63: #{tpu_custom_call.1} parent=59 // pred_region
          %s1404 = ssub.s32 32, 32
          %1405 = vsyncadd %s1396, %s1404
          %s1406 = smul.addr %s24, 32
          %s1407 = scalar_lea.hbm %s10, %s1406
          %s1409 = sshll.u32 %s1399, 4
          %s1410 = int_to_ptr.vmem [resolvable:$true] %s1409
          %1412 = dma.vmem_to_hbm [thread:$0]  %s1410, 32, %s1407, %s1396
        $region64: #{tpu_custom_call.1} parent=59 // pred_fallthru
          _
      $region60: #{tpu_custom_call.1} parent=5 // pred_fallthru
        _
      %p1413 = scmp.le.s32.totalorder 2, %s19
      // Predicated region
      $region65: #{tpu_custom_call.1} parent=5 // pred_check
        %p1414 = pneg %p1413
      $region66: #{tpu_custom_call.1} parent=5 // pred_check_branch
        %1416 = sbr.rel (%p1414) target = $region68
      $region67: #{tpu_custom_call.1} parent=5 // pred_region
        %s1417 = ssub.s32 %s19, 2
        // Predicated region
        $region69: #{tpu_custom_call.1} parent=67 // pred_check
          %p1418 = pneg %p263
        $region70: #{tpu_custom_call.1} parent=67 // pred_check_branch
          %1420 = sbr.rel (%p1418) target = $region72
        $region71: #{tpu_custom_call.1} parent=67 // pred_region
          %s1421 = sand.u32 %s248, 1
          %s1422 = scalar_lea.sflag [#allocation7], %s1421
          %s1423 = sand.u32 %s248, 1
          %s1424 = smul.addr %s1423, 2
          %s1425 = scalar_lea.vmem [#allocation6], %s1424
          %1426 = dma.done %s1422, 32
        $region72: #{tpu_custom_call.1} parent=67 // pred_fallthru
          _
      $region68: #{tpu_custom_call.1} parent=5 // pred_fallthru
        _
    $region6: #{tpu_custom_call.1} parent=1 // loop_footer
      %s23 = sadd.s32 1, %s19
    $region7: #{tpu_custom_call.1} parent=1 // loop_footer_branch
      %18 = sbr.rel target = $region3
    $region8: #{tpu_custom_call.1} parent=1 // loop_exit
      _
    %1427 = vsyncpa [#allocation7], 1
    %s1428 = scalar_lea.sflag [#allocation7], 1
    %1429 = vsyncpa %s1428, 1

</llo_original>
